<compile_context>
chip_gen: v7x
topology: tpu7x:2x2x1
jax: 0.10.0
libtpu: 0.0.40
codegen_flags: <defaults>
</compile_context>

<pallas_src>
import functools

import numpy as np

import jax
import jax.numpy as jnp
from jax.experimental import pallas as pl
from jax.experimental.pallas import tpu as pltpu


# ------------------------------ Fused kernel ------------------------------- #

def decoder_fused_kernel(tok_ref,                      # VMEM (B, 1)   int32 tokens
                         emb_ref,                      # VMEM (VOCAB, E_pad) f32
                         h0_ref, c0_ref,               # VMEM (L, B, H) f32
                         w_ih0_ref,                    # VMEM (E_pad, 4H) bf16
                         w_rec_ref,                    # VMEM (2L-1, H, 4H) bf16
                         b_lstm_ref,                   # VMEM (L, 1, 4H) f32
                         w_fch_ref, b_fch_ref,         # VMEM (H, H) bf16, (1, H) f32
                         w_fco_ref, b_fco_ref,         # VMEM (H, Vp) bf16, (1, Vp) f32
                         pred_ref,                     # out  (B, Vp) f32
                         hid_ref, cell_ref):           # out  (L, B, H) f32
    num_layers, batch, hid = h0_ref.shape
    vocab = emb_ref.shape[0]

    # ---- Embedding lookup as a single one-hot matmul on the (idle) MXU. ----
    # dropout = identity (eval mode).
    tok = tok_ref[...]                                             # (B, 1) int32
    ids = jax.lax.broadcasted_iota(jnp.int32, (batch, vocab), 1)   # (B, VOCAB)
    one_hot = (ids == tok).astype(jnp.float32)
    x = jnp.dot(one_hot, emb_ref[...],
                preferred_element_type=jnp.float32)                # (B, E_pad) f32

    # ---- Static unrolled layer loop (sequential dependency anyway). --------
    # Gates are computed as x @ W_ih + h @ W_hh (no [x, h] concat, no padded
    # K-rows).  h_new / c_new live in vregs; fc_hidden is deferred to after
    # the loop so the serial chain is only: gather -> gates -> cell -> h_new.
    h_list = []
    for l in range(num_layers):
        w_in = w_ih0_ref[...] if l == 0 else w_rec_ref[num_layers - 1 + l]
        gates = (jnp.dot(x.astype(jnp.bfloat16), w_in,
                         preferred_element_type=jnp.float32)
                 + jnp.dot(h0_ref[l].astype(jnp.bfloat16), w_rec_ref[l],
                           preferred_element_type=jnp.float32)
                 + b_lstm_ref[l])                                  # (B, 4H) f32

        # H is a multiple of 128 -> each gate slice is vreg (lane) aligned.
        i_g = jax.nn.sigmoid(gates[:, 0 * hid:1 * hid])
        f_g = jax.nn.sigmoid(gates[:, 1 * hid:2 * hid])
        g_g = jnp.tanh(gates[:, 2 * hid:3 * hid])
        o_g = jax.nn.sigmoid(gates[:, 3 * hid:4 * hid])

        c_new = f_g * c0_ref[l] + i_g * g_g                        # f32 VPU math
        h_new = o_g * jnp.tanh(c_new)

        cell_ref[l] = c_new                                        # direct write
        h_list.append(h_new)
        x = h_new                                  # inter-layer dropout = identity (eval)

    # ---- fc_hidden on ALL layers at once (off the serial chain, M = L*B). --
    h_all = jnp.concatenate(h_list, axis=0) if num_layers > 1 else h_list[0]
    hid_fc = (jnp.dot(h_all.astype(jnp.bfloat16), w_fch_ref[...],
                      preferred_element_type=jnp.float32)
              + b_fch_ref[...])                                    # (L*B, H)
    hid_ref[...] = hid_fc.reshape(num_layers, batch, hid)

    # ---- fc_output on the last layer (seq_len == 1).  Vp is a multiple of --
    # 128 so this store is an unmasked full-width vst.
    pred_ref[...] = (jnp.dot(h_list[-1].astype(jnp.bfloat16), w_fco_ref[...],
                             preferred_element_type=jnp.float32)
                     + b_fco_ref[...])


# --------------------------------- Wrapper ---------------------------------- #

def decoder_forward(params, x_tokens, hidden, cell):
    """x_tokens: (B,) int32; hidden, cell: (L, B, H) float32."""
    L, B, H = hidden.shape
    v_out = params["output_size"]
    v_pad = params["w_fc_output"].shape[1]

    out_shape = (
        jax.ShapeDtypeStruct((B, v_pad), jnp.float32),   # predictions (lane-padded)
        jax.ShapeDtypeStruct((L, B, H), jnp.float32),    # fc_hidden(hidden)
        jax.ShapeDtypeStruct((L, B, H), jnp.float32),    # cell
    )
    vmem = pl.BlockSpec(memory_space=pltpu.MemorySpace.VMEM)

    # Whole forward in ONE pallas_call; total working set is a few hundred KB,
    # far below VMEM on v5e/v6e/v7x, so no grid / tiling / pipelining needed.
    # (When scaling H / L / vocab, switch to grid=(L,) with a per-layer
    # BlockSpec on the LSTM weights and tile fc_output over Vp.)
    preds_p, hid_fc, cell_new = pl.pallas_call(
        decoder_fused_kernel,
        out_shape=out_shape,
        in_specs=[vmem] * 11,
        out_specs=(vmem, vmem, vmem),
    )(x_tokens.reshape(B, 1).astype(jnp.int32),
      params["embedding"], hidden, cell,
      params["w_ih0"], params["w_rec"], params["b_lstm"],
      params["w_fc_hidden"], params["b_fc_hidden"],
      params["w_fc_output"], params["b_fc_output"])

    return preds_p[:, :v_out], hid_fc, cell_new


# --------------------------- Deterministic params --------------------------- #

def init_params(key, input_size, embedding_size, hidden_size, output_size,
                num_layers):
    """Builds parameters already in the fused kernel layout."""
    H, E, L = hidden_size, embedding_size, num_layers
    e_pad = ((E + 7) // 8) * 8                          # sublane-pad only (no max(E,H) padding)
    v_pad = max(128, ((output_size + 127) // 128) * 128)

    keys = jax.random.split(key, 3 * L + 5)
    it = iter(keys)

    def rand(shape):
        return jax.random.normal(next(it), shape, dtype=jnp.float32) * 0.02

    # Embedding table (extra columns beyond E are zero).
    emb = jnp.zeros((input_size, e_pad), jnp.float32).at[:, :E].set(
        rand((input_size, E)))

    # Layer-0 input weights W_ih^T: only E real K-rows.
    w_ih0 = (jnp.zeros((e_pad, 4 * H), jnp.float32)
             .at[:E].set(rand((E, 4 * H))).astype(jnp.bfloat16))

    # w_rec[l]           = W_hh[l]^T  for l = 0 .. L-1
    # w_rec[L - 1 + l]   = W_ih[l]^T  for l = 1 .. L-1 (input width H for l > 0)
    # Gate order i, f, g, o along the 4H axis.
    w_hh = [rand((H, 4 * H)) for _ in range(L)]
    w_ih_rest = [rand((H, 4 * H)) for _ in range(1, L)]
    w_rec = jnp.stack(w_hh + w_ih_rest).astype(jnp.bfloat16)       # (2L-1, H, 4H)

    # Merged bias (= b_ih + b_hh when loading a real checkpoint).
    b_lstm = jnp.stack([rand((1, 4 * H)) for _ in range(L)])       # (L, 1, 4H)

    w_fch = rand((H, H)).astype(jnp.bfloat16)
    b_fch = rand((1, H))

    w_fco = (jnp.zeros((H, v_pad), jnp.float32)
             .at[:, :output_size].set(rand((H, output_size))).astype(jnp.bfloat16))
    b_fco = jnp.zeros((1, v_pad), jnp.float32).at[:, :output_size].set(
        rand((1, output_size)))

    return {
        "embedding": emb,
        "w_ih0": w_ih0, "w_rec": w_rec, "b_lstm": b_lstm,
        "w_fc_hidden": w_fch, "b_fc_hidden": b_fch,
        "w_fc_output": w_fco, "b_fc_output": b_fco,
        "output_size": output_size,
    }


# ------------------------- Pure-JAX reference (check) ----------------------- #

def decoder_reference(params, x_tokens, hidden, cell):
    """Mirrors the kernel math (same bf16 weight/activation casts), pure JAX."""
    L, B, H = hidden.shape

    def b2f(a):  # match the kernel's bf16 activation rounding
        return a.astype(jnp.bfloat16).astype(jnp.float32)

    x = params["embedding"][x_tokens]                              # (B, E_pad)
    w_ih0 = params["w_ih0"].astype(jnp.float32)
    w_rec = params["w_rec"].astype(jnp.float32)
    b_lstm = params["b_lstm"]

    h_list, c_list = [], []
    for l in range(L):
        w_in = w_ih0 if l == 0 else w_rec[L - 1 + l]
        gates = b2f(x) @ w_in + b2f(hidden[l]) @ w_rec[l] + b_lstm[l]
        i_g = jax.nn.sigmoid(gates[:, 0 * H:1 * H])
        f_g = jax.nn.sigmoid(gates[:, 1 * H:2 * H])
        g_g = jnp.tanh(gates[:, 2 * H:3 * H])
        o_g = jax.nn.sigmoid(gates[:, 3 * H:4 * H])
        c_new = f_g * cell[l] + i_g * g_g
        h_new = o_g * jnp.tanh(c_new)
        h_list.append(h_new)
        c_list.append(c_new)
        x = h_new

    h_stack = jnp.stack(h_list)                                    # (L, B, H)
    hid_fc = (b2f(h_stack) @ params["w_fc_hidden"].astype(jnp.float32)
              + params["b_fc_hidden"])
    preds = (b2f(h_list[-1]) @ params["w_fc_output"].astype(jnp.float32)
             + params["b_fc_output"])
    return (preds[:, :params["output_size"]], hid_fc, jnp.stack(c_list))


# ----------------------------------- Main ------------------------------------ #

if __name__ == "__main__":
    # Small shapes consistent with the module's forward (single decode step).
    B = 8             # batch
    INPUT_VOCAB = 20  # nn.Embedding(input_size, ...)
    E = 24            # embedding_size (deliberately != H to exercise layer-0 path)
    H = 128           # hidden_size (4H = 512; gate slices vreg-aligned)
    V = 16            # output_size = len(target_vocab)
    L = 2             # stacked LSTM layers

    key = jax.random.PRNGKey(0)
    k_par, k_tok, k_h, k_c = jax.random.split(key, 4)

    params = init_params(k_par, INPUT_VOCAB, E, H, V, L)

    x_tokens = jax.random.randint(k_tok, (B,), 0, INPUT_VOCAB, dtype=jnp.int32)
    hidden0 = jax.random.normal(k_h, (L, B, H), dtype=jnp.float32)
    cell0 = jax.random.normal(k_c, (L, B, H), dtype=jnp.float32)

    fwd = jax.jit(functools.partial(decoder_forward, params))
    predictions, hidden, cell = fwd(x_tokens, hidden0, cell0)
    jax.block_until_ready((predictions, hidden, cell))

    assert predictions.shape == (B, V)
    assert hidden.shape == (L, B, H)
    assert cell.shape == (L, B, H)

    # Validate against the pure-JAX reference (bf16 weights -> relaxed tolerance).
    ref_p, ref_h, ref_c = decoder_reference(params, x_tokens, hidden0, cell0)
    np.testing.assert_allclose(np.asarray(predictions), np.asarray(ref_p),
                               atol=2e-2, rtol=2e-2)
    np.testing.assert_allclose(np.asarray(hidden), np.asarray(ref_h),
                               atol=2e-2, rtol=2e-2)
    np.testing.assert_allclose(np.asarray(cell), np.asarray(ref_c),
                               atol=2e-2, rtol=2e-2)

    print("KERNEL_OK")
</pallas_src>

<mosaic_0001>
module attributes {stable_mosaic.version = 11 : i64} {
  func.func @decoder_fused_kernel(%arg0: memref<8x1xi32, #tpu.memory_space<vmem>>, %arg1: memref<20x24xf32, #tpu.memory_space<vmem>>, %arg2: memref<2x8x128xf32, #tpu.memory_space<vmem>>, %arg3: memref<2x8x128xf32, #tpu.memory_space<vmem>>, %arg4: memref<24x512xbf16, #tpu.memory_space<vmem>>, %arg5: memref<3x128x512xbf16, #tpu.memory_space<vmem>>, %arg6: memref<2x1x512xf32, #tpu.memory_space<vmem>>, %arg7: memref<128x128xbf16, #tpu.memory_space<vmem>>, %arg8: memref<1x128xf32, #tpu.memory_space<vmem>>, %arg9: memref<128x128xbf16, #tpu.memory_space<vmem>>, %arg10: memref<1x128xf32, #tpu.memory_space<vmem>>, %arg11: memref<8x128xf32, #tpu.memory_space<vmem>>, %arg12: memref<2x8x128xf32, #tpu.memory_space<vmem>>, %arg13: memref<2x8x128xf32, #tpu.memory_space<vmem>>) attributes {dimension_semantics = [], scalar_prefetch = 0 : i64, scratch_operands = 0 : i64, tpu.core_type = #tpu.core_type<tc>} {
    %c0 = arith.constant 0 : index
    %c0_0 = arith.constant 0 : index
    %0 = vector.load %arg0[%c0, %c0_0] : memref<8x1xi32, #tpu.memory_space<vmem>>, vector<8x1xi32>
    %1 = tpu.iota {dimensions = array<i32: 1>} : vector<8x20xi32>
    %2 = vector.broadcast %0 : vector<8x1xi32> to vector<8x20xi32>
    %3 = arith.cmpi eq, %1, %2 : vector<8x20xi32>
    %4 = arith.extui %3 : vector<8x20xi1> to vector<8x20xi32>
    %5 = arith.sitofp %4 : vector<8x20xi32> to vector<8x20xf32>
    %c0_1 = arith.constant 0 : index
    %c0_2 = arith.constant 0 : index
    %6 = vector.load %arg1[%c0_1, %c0_2] : memref<20x24xf32, #tpu.memory_space<vmem>>, vector<20x24xf32>
    %cst = arith.constant dense<0.000000e+00> : vector<8x24xf32>
    %7 = tpu.matmul %5, %6, %cst {dimension_numbers = #tpu.dot_dimension_numbers<[1], [0], [0], [1], [0, 0, 1, 1], [], []>} : vector<8x20xf32>, vector<20x24xf32>, vector<8x24xf32> -> vector<8x24xf32>
    %c0_3 = arith.constant 0 : index
    %c0_4 = arith.constant 0 : index
    %8 = vector.load %arg4[%c0_3, %c0_4] : memref<24x512xbf16, #tpu.memory_space<vmem>>, vector<24x512xbf16>
    %9 = arith.truncf %7 : vector<8x24xf32> to vector<8x24xbf16>
    %cst_5 = arith.constant dense<0.000000e+00> : vector<8x512xf32>
    %10 = tpu.matmul %9, %8, %cst_5 {dimension_numbers = #tpu.dot_dimension_numbers<[1], [0], [0], [1], [0, 0, 1, 1], [], []>} : vector<8x24xbf16>, vector<24x512xbf16>, vector<8x512xf32> -> vector<8x512xf32>
    %c0_6 = arith.constant 0 : index
    %c0_7 = arith.constant 0 : index
    %c0_8 = arith.constant 0 : index
    %11 = vector.load %arg2[%c0_6, %c0_7, %c0_8] : memref<2x8x128xf32, #tpu.memory_space<vmem>>, vector<1x8x128xf32>
    %12 = vector.shape_cast %11 : vector<1x8x128xf32> to vector<8x128xf32>
    %13 = arith.truncf %12 : vector<8x128xf32> to vector<8x128xbf16>
    %c0_9 = arith.constant 0 : index
    %c0_10 = arith.constant 0 : index
    %c0_11 = arith.constant 0 : index
    %14 = vector.load %arg5[%c0_9, %c0_10, %c0_11] : memref<3x128x512xbf16, #tpu.memory_space<vmem>>, vector<1x128x512xbf16>
    %15 = vector.shape_cast %14 : vector<1x128x512xbf16> to vector<128x512xbf16>
    %cst_12 = arith.constant dense<0.000000e+00> : vector<8x512xf32>
    %16 = tpu.matmul %13, %15, %cst_12 {dimension_numbers = #tpu.dot_dimension_numbers<[1], [0], [0], [1], [0, 0, 1, 1], [], []>} : vector<8x128xbf16>, vector<128x512xbf16>, vector<8x512xf32> -> vector<8x512xf32>
    %17 = arith.addf %10, %16 : vector<8x512xf32>
    %c0_13 = arith.constant 0 : index
    %c0_14 = arith.constant 0 : index
    %c0_15 = arith.constant 0 : index
    %18 = vector.load %arg6[%c0_13, %c0_14, %c0_15] : memref<2x1x512xf32, #tpu.memory_space<vmem>>, vector<1x1x512xf32>
    %19 = vector.shape_cast %18 : vector<1x1x512xf32> to vector<1x512xf32>
    %20 = vector.broadcast %19 : vector<1x512xf32> to vector<8x512xf32>
    %21 = arith.addf %17, %20 : vector<8x512xf32>
    %22 = vector.extract_strided_slice %21 {offsets = [0, 0], sizes = [8, 128], strides = [1, 1]} : vector<8x512xf32> to vector<8x128xf32>
    %23 = arith.negf %22 : vector<8x128xf32>
    %24 = math.exp %23 : vector<8x128xf32>
    %cst_16 = arith.constant 1.000000e+00 : f32
    %25 = vector.broadcast %cst_16 : f32 to vector<8x128xf32>
    %26 = arith.addf %25, %24 : vector<8x128xf32>
    %27 = arith.divf %25, %26 : vector<8x128xf32>
    %28 = vector.extract_strided_slice %21 {offsets = [0, 128], sizes = [8, 128], strides = [1, 1]} : vector<8x512xf32> to vector<8x128xf32>
    %29 = arith.negf %28 : vector<8x128xf32>
    %30 = math.exp %29 : vector<8x128xf32>
    %cst_17 = arith.constant 1.000000e+00 : f32
    %31 = vector.broadcast %cst_17 : f32 to vector<8x128xf32>
    %32 = arith.addf %31, %30 : vector<8x128xf32>
    %33 = arith.divf %31, %32 : vector<8x128xf32>
    %34 = vector.extract_strided_slice %21 {offsets = [0, 256], sizes = [8, 128], strides = [1, 1]} : vector<8x512xf32> to vector<8x128xf32>
    %35 = math.tanh %34 : vector<8x128xf32>
    %36 = vector.extract_strided_slice %21 {offsets = [0, 384], sizes = [8, 128], strides = [1, 1]} : vector<8x512xf32> to vector<8x128xf32>
    %37 = arith.negf %36 : vector<8x128xf32>
    %38 = math.exp %37 : vector<8x128xf32>
    %cst_18 = arith.constant 1.000000e+00 : f32
    %39 = vector.broadcast %cst_18 : f32 to vector<8x128xf32>
    %40 = arith.addf %39, %38 : vector<8x128xf32>
    %41 = arith.divf %39, %40 : vector<8x128xf32>
    %c0_19 = arith.constant 0 : index
    %c0_20 = arith.constant 0 : index
    %c0_21 = arith.constant 0 : index
    %42 = vector.load %arg3[%c0_19, %c0_20, %c0_21] : memref<2x8x128xf32, #tpu.memory_space<vmem>>, vector<1x8x128xf32>
    %43 = vector.shape_cast %42 : vector<1x8x128xf32> to vector<8x128xf32>
    %44 = arith.mulf %33, %43 : vector<8x128xf32>
    %45 = arith.mulf %27, %35 : vector<8x128xf32>
    %46 = arith.addf %44, %45 : vector<8x128xf32>
    %47 = math.tanh %46 : vector<8x128xf32>
    %48 = arith.mulf %41, %47 : vector<8x128xf32>
    %c0_22 = arith.constant 0 : index
    %c0_23 = arith.constant 0 : index
    %c0_24 = arith.constant 0 : index
    %49 = vector.load %arg13[%c0_22, %c0_23, %c0_24] : memref<2x8x128xf32, #tpu.memory_space<vmem>>, vector<1x8x128xf32>
    %50 = vector.shape_cast %49 : vector<1x8x128xf32> to vector<8x128xf32>
    %51 = vector.shape_cast %46 : vector<8x128xf32> to vector<1x8x128xf32>
    tpu.vector_store %arg13[%c0_22, %c0_23, %c0_24], %51 {strides = array<i32>} : memref<2x8x128xf32, #tpu.memory_space<vmem>>, vector<1x8x128xf32>,
    %c2 = arith.constant 2 : index
    %c0_25 = arith.constant 0 : index
    %c0_26 = arith.constant 0 : index
    %52 = vector.load %arg5[%c2, %c0_25, %c0_26] : memref<3x128x512xbf16, #tpu.memory_space<vmem>>, vector<1x128x512xbf16>
    %53 = vector.shape_cast %52 : vector<1x128x512xbf16> to vector<128x512xbf16>
    %54 = arith.truncf %48 : vector<8x128xf32> to vector<8x128xbf16>
    %cst_27 = arith.constant dense<0.000000e+00> : vector<8x512xf32>
    %55 = tpu.matmul %54, %53, %cst_27 {dimension_numbers = #tpu.dot_dimension_numbers<[1], [0], [0], [1], [0, 0, 1, 1], [], []>} : vector<8x128xbf16>, vector<128x512xbf16>, vector<8x512xf32> -> vector<8x512xf32>
    %c1 = arith.constant 1 : index
    %c0_28 = arith.constant 0 : index
    %c0_29 = arith.constant 0 : index
    %56 = vector.load %arg2[%c1, %c0_28, %c0_29] : memref<2x8x128xf32, #tpu.memory_space<vmem>>, vector<1x8x128xf32>
    %57 = vector.shape_cast %56 : vector<1x8x128xf32> to vector<8x128xf32>
    %58 = arith.truncf %57 : vector<8x128xf32> to vector<8x128xbf16>
    %c1_30 = arith.constant 1 : index
    %c0_31 = arith.constant 0 : index
    %c0_32 = arith.constant 0 : index
    %59 = vector.load %arg5[%c1_30, %c0_31, %c0_32] : memref<3x128x512xbf16, #tpu.memory_space<vmem>>, vector<1x128x512xbf16>
    %60 = vector.shape_cast %59 : vector<1x128x512xbf16> to vector<128x512xbf16>
    %cst_33 = arith.constant dense<0.000000e+00> : vector<8x512xf32>
    %61 = tpu.matmul %58, %60, %cst_33 {dimension_numbers = #tpu.dot_dimension_numbers<[1], [0], [0], [1], [0, 0, 1, 1], [], []>} : vector<8x128xbf16>, vector<128x512xbf16>, vector<8x512xf32> -> vector<8x512xf32>
    %62 = arith.addf %55, %61 : vector<8x512xf32>
    %c1_34 = arith.constant 1 : index
    %c0_35 = arith.constant 0 : index
    %c0_36 = arith.constant 0 : index
    %63 = vector.load %arg6[%c1_34, %c0_35, %c0_36] : memref<2x1x512xf32, #tpu.memory_space<vmem>>, vector<1x1x512xf32>
    %64 = vector.shape_cast %63 : vector<1x1x512xf32> to vector<1x512xf32>
    %65 = vector.broadcast %64 : vector<1x512xf32> to vector<8x512xf32>
    %66 = arith.addf %62, %65 : vector<8x512xf32>
    %67 = vector.extract_strided_slice %66 {offsets = [0, 0], sizes = [8, 128], strides = [1, 1]} : vector<8x512xf32> to vector<8x128xf32>
    %68 = arith.negf %67 : vector<8x128xf32>
    %69 = math.exp %68 : vector<8x128xf32>
    %cst_37 = arith.constant 1.000000e+00 : f32
    %70 = vector.broadcast %cst_37 : f32 to vector<8x128xf32>
    %71 = arith.addf %70, %69 : vector<8x128xf32>
    %72 = arith.divf %70, %71 : vector<8x128xf32>
    %73 = vector.extract_strided_slice %66 {offsets = [0, 128], sizes = [8, 128], strides = [1, 1]} : vector<8x512xf32> to vector<8x128xf32>
    %74 = arith.negf %73 : vector<8x128xf32>
    %75 = math.exp %74 : vector<8x128xf32>
    %cst_38 = arith.constant 1.000000e+00 : f32
    %76 = vector.broadcast %cst_38 : f32 to vector<8x128xf32>
    %77 = arith.addf %76, %75 : vector<8x128xf32>
    %78 = arith.divf %76, %77 : vector<8x128xf32>
    %79 = vector.extract_strided_slice %66 {offsets = [0, 256], sizes = [8, 128], strides = [1, 1]} : vector<8x512xf32> to vector<8x128xf32>
    %80 = math.tanh %79 : vector<8x128xf32>
    %81 = vector.extract_strided_slice %66 {offsets = [0, 384], sizes = [8, 128], strides = [1, 1]} : vector<8x512xf32> to vector<8x128xf32>
    %82 = arith.negf %81 : vector<8x128xf32>
    %83 = math.exp %82 : vector<8x128xf32>
    %cst_39 = arith.constant 1.000000e+00 : f32
    %84 = vector.broadcast %cst_39 : f32 to vector<8x128xf32>
    %85 = arith.addf %84, %83 : vector<8x128xf32>
    %86 = arith.divf %84, %85 : vector<8x128xf32>
    %c1_40 = arith.constant 1 : index
    %c0_41 = arith.constant 0 : index
    %c0_42 = arith.constant 0 : index
    %87 = vector.load %arg3[%c1_40, %c0_41, %c0_42] : memref<2x8x128xf32, #tpu.memory_space<vmem>>, vector<1x8x128xf32>
    %88 = vector.shape_cast %87 : vector<1x8x128xf32> to vector<8x128xf32>
    %89 = arith.mulf %78, %88 : vector<8x128xf32>
    %90 = arith.mulf %72, %80 : vector<8x128xf32>
    %91 = arith.addf %89, %90 : vector<8x128xf32>
    %92 = math.tanh %91 : vector<8x128xf32>
    %93 = arith.mulf %86, %92 : vector<8x128xf32>
    %c1_43 = arith.constant 1 : index
    %c0_44 = arith.constant 0 : index
    %c0_45 = arith.constant 0 : index
    %94 = vector.load %arg13[%c1_43, %c0_44, %c0_45] : memref<2x8x128xf32, #tpu.memory_space<vmem>>, vector<1x8x128xf32>
    %95 = vector.shape_cast %94 : vector<1x8x128xf32> to vector<8x128xf32>
    %96 = vector.shape_cast %91 : vector<8x128xf32> to vector<1x8x128xf32>
    tpu.vector_store %arg13[%c1_43, %c0_44, %c0_45], %96 {strides = array<i32>} : memref<2x8x128xf32, #tpu.memory_space<vmem>>, vector<1x8x128xf32>,
    %97 = tpu.concatenate %48, %93 in 0 : vector<8x128xf32>, vector<8x128xf32> -> vector<16x128xf32>
    %98 = arith.truncf %97 : vector<16x128xf32> to vector<16x128xbf16>
    %c0_46 = arith.constant 0 : index
    %c0_47 = arith.constant 0 : index
    %99 = vector.load %arg7[%c0_46, %c0_47] : memref<128x128xbf16, #tpu.memory_space<vmem>>, vector<128x128xbf16>
    %cst_48 = arith.constant dense<0.000000e+00> : vector<16x128xf32>
    %100 = tpu.matmul %98, %99, %cst_48 {dimension_numbers = #tpu.dot_dimension_numbers<[1], [0], [0], [1], [0, 0, 1, 1], [], []>} : vector<16x128xbf16>, vector<128x128xbf16>, vector<16x128xf32> -> vector<16x128xf32>
    %c0_49 = arith.constant 0 : index
    %c0_50 = arith.constant 0 : index
    %101 = vector.load %arg8[%c0_49, %c0_50] : memref<1x128xf32, #tpu.memory_space<vmem>>, vector<1x128xf32>
    %102 = vector.broadcast %101 : vector<1x128xf32> to vector<16x128xf32>
    %103 = arith.addf %100, %102 : vector<16x128xf32>
    %104 = vector.shape_cast %103 : vector<16x128xf32> to vector<2x8x128xf32>
    %c0_51 = arith.constant 0 : index
    %c0_52 = arith.constant 0 : index
    %c0_53 = arith.constant 0 : index
    %105 = vector.load %arg12[%c0_51, %c0_52, %c0_53] : memref<2x8x128xf32, #tpu.memory_space<vmem>>, vector<2x8x128xf32>
    tpu.vector_store %arg12[%c0_51, %c0_52, %c0_53], %104 {strides = array<i32>} : memref<2x8x128xf32, #tpu.memory_space<vmem>>, vector<2x8x128xf32>,
    %106 = arith.truncf %93 : vector<8x128xf32> to vector<8x128xbf16>
    %c0_54 = arith.constant 0 : index
    %c0_55 = arith.constant 0 : index
    %107 = vector.load %arg9[%c0_54, %c0_55] : memref<128x128xbf16, #tpu.memory_space<vmem>>, vector<128x128xbf16>
    %cst_56 = arith.constant dense<0.000000e+00> : vector<8x128xf32>
    %108 = tpu.matmul %106, %107, %cst_56 {dimension_numbers = #tpu.dot_dimension_numbers<[1], [0], [0], [1], [0, 0, 1, 1], [], []>} : vector<8x128xbf16>, vector<128x128xbf16>, vector<8x128xf32> -> vector<8x128xf32>
    %c0_57 = arith.constant 0 : index
    %c0_58 = arith.constant 0 : index
    %109 = vector.load %arg10[%c0_57, %c0_58] : memref<1x128xf32, #tpu.memory_space<vmem>>, vector<1x128xf32>
    %110 = vector.broadcast %109 : vector<1x128xf32> to vector<8x128xf32>
    %111 = arith.addf %108, %110 : vector<8x128xf32>
    %c0_59 = arith.constant 0 : index
    %c0_60 = arith.constant 0 : index
    %112 = vector.load %arg11[%c0_59, %c0_60] : memref<8x128xf32, #tpu.memory_space<vmem>>, vector<8x128xf32>
    tpu.vector_store %arg11[%c0_59, %c0_60], %111 {strides = array<i32>} : memref<8x128xf32, #tpu.memory_space<vmem>>, vector<8x128xf32>,
    return
  }
}

</mosaic_0001>

<llo_original>
// kernel: decoder_forward.1
$region0: #{decoder_forward.1}
  #allocation0 [shape = 'u32[]', space=smem, size = 0x4, offset = 0x4, fixed_abs, tag = 'smem constant byte address 0x4 - core index']
  #allocation1 [shape = 'u32[144,128]{1,0:T(1,128)}', space=vmem, size = 0x12000, scoped, tag = 'internal scratch']
  %s0 = inlined_call_operand.vmem [shape: s32[8,1], index: 0, kind: input, shape index: {}]
  %s1 = inlined_call_operand.vmem [shape: f32[20,24], index: 1, kind: input, shape index: {}]
  %s2 = inlined_call_operand.vmem [shape: f32[2,8,128], index: 2, kind: input, shape index: {}]
  %s3 = inlined_call_operand.vmem [shape: f32[2,8,128], index: 3, kind: input, shape index: {}]
  %s4 = inlined_call_operand.vmem [shape: bf16[24,512], index: 4, kind: input, shape index: {}]
  %s5 = inlined_call_operand.vmem [shape: bf16[3,128,512], index: 5, kind: input, shape index: {}]
  %s6 = inlined_call_operand.vmem [shape: f32[2,1,512], index: 6, kind: input, shape index: {}]
  %s7 = inlined_call_operand.vmem [shape: bf16[128,128], index: 7, kind: input, shape index: {}]
  %s8 = inlined_call_operand.vmem [shape: f32[1,128], index: 8, kind: input, shape index: {}]
  %s9 = inlined_call_operand.vmem [shape: bf16[128,128], index: 9, kind: input, shape index: {}]
  %s10 = inlined_call_operand.vmem [shape: f32[1,128], index: 10, kind: input, shape index: {}]
  %s11 = inlined_call_operand.hbm [shape: f32[8,128], index: 11, kind: output, shape index: {0}]
  %s12 = inlined_call_operand.hbm [shape: f32[2,8,128], index: 12, kind: output, shape index: {1}]
  %s13 = inlined_call_operand.hbm [shape: f32[2,8,128], index: 13, kind: output, shape index: {2}]
  %14 = xla_tuple %s11, %s12, %s13
  %s15 = sld [smem:[#allocation0]]
  $region70: #{decoder_forward.1} parent=0
    _
  %s17 = ssub.s32 1, %s15
  %s18 = scalar_select 0, %s17, %s15
  $region1: #{decoder_forward.1} parent=0
    #allocation2 [shape = 'u8[4096]{0}', space=vmem, size = 0x1000, scoped, tag = 'output window, operand 0, single buffered']
    #allocation3 [shape = 's32[1]{0}', space=sflag, size = 0x4, scoped, tag = 'scoped memory for decoder_forward.1']
    #allocation4 [shape = 'u8[8192]{0}', space=vmem, size = 0x2000, scoped, tag = 'output window, operand 1, single buffered']
    #allocation5 [shape = 's32[1]{0}', space=sflag, size = 0x4, scoped, tag = 'scoped memory for decoder_forward.1']
    #allocation6 [shape = 'u8[8192]{0}', space=vmem, size = 0x2000, scoped, tag = 'output window, operand 2, single buffered']
    %19 = vsyncpa [#allocation3], 0
    %20 = vsyncpa [#allocation5], 0
    // Predicated region
    $region2: #{decoder_forward.1} parent=1 // pred_check
      _
    $region3: #{decoder_forward.1} parent=1 // pred_check_branch
      %22 = sbr.rel (0) target = $region5
    $region4: #{decoder_forward.1} parent=1 // pred_region
      _
    $region5: #{decoder_forward.1} parent=1 // pred_fallthru
      _
    // Predicated region
    $region6: #{decoder_forward.1} parent=1 // pred_check
      _
    $region7: #{decoder_forward.1} parent=1 // pred_check_branch
      %24 = sbr.rel (0) target = $region9
    $region8: #{decoder_forward.1} parent=1 // pred_region
      _
    $region9: #{decoder_forward.1} parent=1 // pred_fallthru
      _
    // Predicated region
    $region10: #{decoder_forward.1} parent=1 // pred_check
      _
    $region11: #{decoder_forward.1} parent=1 // pred_check_branch
      %26 = sbr.rel (0) target = $region13
    $region12: #{decoder_forward.1} parent=1 // pred_region
      _
    $region13: #{decoder_forward.1} parent=1 // pred_fallthru
      _
    // Predicated region
    $region14: #{decoder_forward.1} parent=1 // pred_check
      _
    $region15: #{decoder_forward.1} parent=1 // pred_check_branch
      %28 = sbr.rel (0) target = $region17
    $region16: #{decoder_forward.1} parent=1 // pred_region
      _
    $region17: #{decoder_forward.1} parent=1 // pred_fallthru
      _
    // Predicated region
    $region18: #{decoder_forward.1} parent=1 // pred_check
      _
    $region19: #{decoder_forward.1} parent=1 // pred_check_branch
      %30 = sbr.rel (0) target = $region21
    $region20: #{decoder_forward.1} parent=1 // pred_region
      _
    $region21: #{decoder_forward.1} parent=1 // pred_fallthru
      _
    // Predicated region
    $region22: #{decoder_forward.1} parent=1 // pred_check
      _
    $region23: #{decoder_forward.1} parent=1 // pred_check_branch
      %32 = sbr.rel (0) target = $region25
    $region24: #{decoder_forward.1} parent=1 // pred_region
      _
    $region25: #{decoder_forward.1} parent=1 // pred_fallthru
      _
    // Predicated region
    $region26: #{decoder_forward.1} parent=1 // pred_check
      _
    $region27: #{decoder_forward.1} parent=1 // pred_check_branch
      %34 = sbr.rel (0) target = $region29
    $region28: #{decoder_forward.1} parent=1 // pred_region
      _
    $region29: #{decoder_forward.1} parent=1 // pred_fallthru
      _
    // Predicated region
    $region30: #{decoder_forward.1} parent=1 // pred_check
      _
    $region31: #{decoder_forward.1} parent=1 // pred_check_branch
      %36 = sbr.rel (0) target = $region33
    $region32: #{decoder_forward.1} parent=1 // pred_region
      _
    $region33: #{decoder_forward.1} parent=1 // pred_fallthru
      _
    // Predicated region
    $region34: #{decoder_forward.1} parent=1 // pred_check
      _
    $region35: #{decoder_forward.1} parent=1 // pred_check_branch
      %38 = sbr.rel (0) target = $region37
    $region36: #{decoder_forward.1} parent=1 // pred_region
      _
    $region37: #{decoder_forward.1} parent=1 // pred_fallthru
      _
    // Predicated region
    $region38: #{decoder_forward.1} parent=1 // pred_check
      _
    $region39: #{decoder_forward.1} parent=1 // pred_check_branch
      %40 = sbr.rel (0) target = $region41
    $region40: #{decoder_forward.1} parent=1 // pred_region
      _
    $region41: #{decoder_forward.1} parent=1 // pred_fallthru
      _
    // Predicated region
    $region42: #{decoder_forward.1} parent=1 // pred_check
      _
    $region43: #{decoder_forward.1} parent=1 // pred_check_branch
      %42 = sbr.rel (0) target = $region45
    $region44: #{decoder_forward.1} parent=1 // pred_region
      _
    $region45: #{decoder_forward.1} parent=1 // pred_fallthru
      _
    %v44 = vld [vmem:[%s0] sm:$0xff]
    %v45 = vlaneseq
    %v46 = vand.u32 %v45, 127
    %47 = vset.pattern.permute.xlu0 0
    %48 = vperm.xlu0 %47, %v44
    %v49 = vpop.permute.xlu0 %48
    %vm50 = vcmp.eq.s32.totalorder %v46, %v49
    %v51 = vsel %vm50, 1, 0
    %v52 = vcvt.s32.f32 %v51
    %v53 = vld [vmem:[%s1] sm:$0xff]
    %v54 = vld [vmem:[%s1 + $0x8] sm:$0xff]
    %v55 = vld [vmem:[%s1 + $0x10] sm:$0xf]
    %vm56 = vcmask 162816
    %v58 = vsel %vm56, %v52, 0
    %vm60 = vcmask 1043456
    %v62 = vsel %vm60, %v55, 0
    %64 = vmatprep.subr.mxu0 0.0
    %65 = vmatpush1.msra.mxu0 %v53
    %66 = vmatprep.subr.mxu0 0.0
    %67 = vmatpush1.msra.mxu0 %v54
    %68 = vmatprep.subr.mxu0 0.0
    %69 = vmatpush1.msra.mxu0 %v62
    %70 = vmatprep.subr.mxu0 0.0
    %71 = vmatpush1.msra.mxu0 0.0
    %72 = vmatprep.subr.mxu0 0.0
    %73 = vmatpush1.msra.mxu0 0.0
    %74 = vmatprep.subr.mxu0 0.0
    %75 = vmatpush1.msra.mxu0 0.0
    %76 = vmatprep.subr.mxu0 0.0
    %77 = vmatpush1.msra.mxu0 0.0
    %78 = vmatprep.subr.mxu0 0.0
    %79 = vmatpush1.msra.mxu0 0.0
    %80 = vmatprep.subr.mxu0 0.0
    %81 = vmatpush1.msra.mxu0 0.0
    %82 = vmatprep.subr.mxu0 0.0
    %83 = vmatpush1.msra.mxu0 0.0
    %84 = vmatprep.subr.mxu0 0.0
    %85 = vmatpush1.msra.mxu0 0.0
    %86 = vmatprep.subr.mxu0 0.0
    %87 = vmatpush1.msra.mxu0 0.0
    %88 = vmatprep.subr.mxu0 0.0
    %89 = vmatpush1.msra.mxu0 0.0
    %90 = vmatprep.subr.mxu0 0.0
    %91 = vmatpush1.msra.mxu0 0.0
    %92 = vmatprep.subr.mxu0 0.0
    %93 = vmatpush1.msra.mxu0 0.0
    %94 = vmatprep.subr.mxu0 0.0
    %95 = vmatpush1.msra.mxu0 0.0
    %96 = vmatprep.subr.mxu0 0.0
    %97 = vmatpush1.msra.mxu0 0.0
    %98 = vmatprep.subr.mxu0 0.0
    %99 = vmatpush1.msra.mxu0 0.0
    %100 = vmatprep.subr.mxu0 0.0
    %101 = vmatpush1.msra.mxu0 0.0
    %102 = vmatprep.subr.mxu0 0.0
    %103 = vmatpush1.msra.mxu0 0.0
    %104 = vmatprep.subr.mxu0 0.0
    %105 = vmatpush1.msra.mxu0 0.0
    %106 = vmatprep.subr.mxu0 0.0
    %107 = vmatpush1.msra.mxu0 0.0
    %108 = vmatprep.subr.mxu0 0.0
    %109 = vmatpush1.msra.mxu0 0.0
    %110 = vmatprep.subr.mxu0 0.0
    %111 = vmatpush1.msra.mxu0 0.0
    %112 = vmatprep.subr.mxu0 0.0
    %113 = vmatpush1.msra.mxu0 0.0
    %114 = vmatprep.subr.mxu0 0.0
    %115 = vmatpush1.msra.mxu0 0.0
    %116 = vmatprep.subr.mxu0 0.0
    %117 = vmatpush1.msra.mxu0 0.0
    %118 = vmatprep.subr.mxu0 0.0
    %119 = vmatpush1.msra.mxu0 0.0
    %120 = vmatprep.subr.mxu0 0.0
    %121 = vmatpush1.msra.mxu0 0.0
    %122 = vmatprep.subr.mxu0 0.0
    %123 = vmatpush1.msra.mxu0 0.0
    %124 = vmatprep.subr.mxu0 0.0
    %125 = vmatpush1.msra.mxu0 0.0
    %126 = vmatprep.subr.mxu0 0.0
    %127 = vmatpush1.msra.mxu0 0.0
    %128 = vmatprep.mubr.f32.mxu0 0.0
    %129 = vmatmul.mubr.f32.gmra.mrb[0].mxu0 %v58
    %v130 = vpop.f32.mrb[0].mxu0
    %v131 = vadd.f32 0.0, %v130
    %v132 = vpop.f32.mrb[0].mxu0
    %133 = vdwg.mxu0
    %v134 = vld [vmem:[%s4] sm:$0xff]
    %v135 = vld [vmem:[%s4 + $0x8] sm:$0xff]
    %v136 = vld [vmem:[%s4 + $0x10] sm:$0xff]
    %v137 = vld [vmem:[%s4 + $0x18] sm:$0xff]
    %v138 = vld [vmem:[%s4 + $0x20] sm:$0xff]
    %v139 = vld [vmem:[%s4 + $0x28] sm:$0xff]
    %v140 = vpack.c.bf16 %v131, %v131
    %v141 = vld [vmem:[%s2] sm:$0xff]
    %v142 = vpack.c.bf16 %v141, %v141
    %v143 = vld [vmem:[%s5] sm:$0xff]
    %v144 = vld [vmem:[%s5 + $0x8] sm:$0xff]
    %v145 = vld [vmem:[%s5 + $0x10] sm:$0xff]
    %v146 = vld [vmem:[%s5 + $0x18] sm:$0xff]
    %v147 = vld [vmem:[%s5 + $0x20] sm:$0xff]
    %v148 = vld [vmem:[%s5 + $0x28] sm:$0xff]
    %v149 = vld [vmem:[%s5 + $0x30] sm:$0xff]
    %v150 = vld [vmem:[%s5 + $0x38] sm:$0xff]
    %v151 = vld [vmem:[%s5 + $0x40] sm:$0xff]
    %v152 = vld [vmem:[%s5 + $0x48] sm:$0xff]
    %v153 = vld [vmem:[%s5 + $0x50] sm:$0xff]
    %v154 = vld [vmem:[%s5 + $0x58] sm:$0xff]
    %v155 = vld [vmem:[%s5 + $0x60] sm:$0xff]
    %v156 = vld [vmem:[%s5 + $0x68] sm:$0xff]
    %v157 = vld [vmem:[%s5 + $0x70] sm:$0xff]
    %v158 = vld [vmem:[%s5 + $0x78] sm:$0xff]
    %v159 = vld [vmem:[%s5 + $0x80] sm:$0xff]
    %v160 = vld [vmem:[%s5 + $0x88] sm:$0xff]
    %v161 = vld [vmem:[%s5 + $0x90] sm:$0xff]
    %v162 = vld [vmem:[%s5 + $0x98] sm:$0xff]
    %v163 = vld [vmem:[%s5 + $0xa0] sm:$0xff]
    %v164 = vld [vmem:[%s5 + $0xa8] sm:$0xff]
    %v165 = vld [vmem:[%s5 + $0xb0] sm:$0xff]
    %v166 = vld [vmem:[%s5 + $0xb8] sm:$0xff]
    %v167 = vld [vmem:[%s5 + $0xc0] sm:$0xff]
    %v168 = vld [vmem:[%s5 + $0xc8] sm:$0xff]
    %v169 = vld [vmem:[%s5 + $0xd0] sm:$0xff]
    %v170 = vld [vmem:[%s5 + $0xd8] sm:$0xff]
    %v171 = vld [vmem:[%s5 + $0xe0] sm:$0xff]
    %v172 = vld [vmem:[%s5 + $0xe8] sm:$0xff]
    %v173 = vld [vmem:[%s5 + $0xf0] sm:$0xff]
    %v174 = vld [vmem:[%s5 + $0xf8] sm:$0xff]
    %v207 = vunpack.c.l.b16 %v143
    %v208 = vunpack.c.h.b16 %v143
    %v209 = vunpack.c.l.b16 %v144
    %v210 = vunpack.c.h.b16 %v144
    %v211 = vunpack.c.l.b16 %v145
    %v212 = vunpack.c.h.b16 %v145
    %v213 = vunpack.c.l.b16 %v146
    %v214 = vunpack.c.h.b16 %v146
    %v215 = vunpack.c.l.b16 %v147
    %v216 = vunpack.c.h.b16 %v147
    %v217 = vunpack.c.l.b16 %v148
    %v218 = vunpack.c.h.b16 %v148
    %v219 = vunpack.c.l.b16 %v149
    %v220 = vunpack.c.h.b16 %v149
    %v221 = vunpack.c.l.b16 %v150
    %v222 = vunpack.c.h.b16 %v150
    %v223 = vunpack.c.l.b16 %v151
    %v224 = vunpack.c.h.b16 %v151
    %v225 = vunpack.c.l.b16 %v152
    %v226 = vunpack.c.h.b16 %v152
    %v227 = vunpack.c.l.b16 %v153
    %v228 = vunpack.c.h.b16 %v153
    %v229 = vunpack.c.l.b16 %v154
    %v230 = vunpack.c.h.b16 %v154
    %v231 = vunpack.c.l.b16 %v155
    %v232 = vunpack.c.h.b16 %v155
    %v233 = vunpack.c.l.b16 %v156
    %v234 = vunpack.c.h.b16 %v156
    %v235 = vunpack.c.l.b16 %v157
    %v236 = vunpack.c.h.b16 %v157
    %v237 = vunpack.c.l.b16 %v158
    %v238 = vunpack.c.h.b16 %v158
    %v239 = vunpack.c.l.b16 %v159
    %v240 = vunpack.c.h.b16 %v159
    %v241 = vunpack.c.l.b16 %v160
    %v242 = vunpack.c.h.b16 %v160
    %v243 = vunpack.c.l.b16 %v161
    %v244 = vunpack.c.h.b16 %v161
    %v245 = vunpack.c.l.b16 %v162
    %v246 = vunpack.c.h.b16 %v162
    %v247 = vunpack.c.l.b16 %v163
    %v248 = vunpack.c.h.b16 %v163
    %v249 = vunpack.c.l.b16 %v164
    %v250 = vunpack.c.h.b16 %v164
    %v251 = vunpack.c.l.b16 %v165
    %v252 = vunpack.c.h.b16 %v165
    %v253 = vunpack.c.l.b16 %v166
    %v254 = vunpack.c.h.b16 %v166
    %v255 = vunpack.c.l.b16 %v167
    %v256 = vunpack.c.h.b16 %v167
    %v257 = vunpack.c.l.b16 %v168
    %v258 = vunpack.c.h.b16 %v168
    %v259 = vunpack.c.l.b16 %v169
    %v260 = vunpack.c.h.b16 %v169
    %v261 = vunpack.c.l.b16 %v170
    %v262 = vunpack.c.h.b16 %v170
    %v263 = vunpack.c.l.b16 %v171
    %v264 = vunpack.c.h.b16 %v171
    %v265 = vunpack.c.l.b16 %v172
    %v266 = vunpack.c.h.b16 %v172
    %v267 = vunpack.c.l.b16 %v173
    %v268 = vunpack.c.h.b16 %v173
    %v269 = vunpack.c.l.b16 %v174
    %v270 = vunpack.c.h.b16 %v174
    %v271 = vpack.c.b16 %v211, %v207
    %v272 = vpack.c.b16 %v212, %v208
    %v273 = vpack.c.b16 %v213, %v209
    %v274 = vpack.c.b16 %v214, %v210
    %v275 = vpack.c.b16 %v219, %v215
    %v276 = vpack.c.b16 %v220, %v216
    %v277 = vpack.c.b16 %v221, %v217
    %v278 = vpack.c.b16 %v222, %v218
    %v279 = vpack.c.b16 %v227, %v223
    %v280 = vpack.c.b16 %v228, %v224
    %v281 = vpack.c.b16 %v229, %v225
    %v282 = vpack.c.b16 %v230, %v226
    %v283 = vpack.c.b16 %v235, %v231
    %v284 = vpack.c.b16 %v236, %v232
    %v285 = vpack.c.b16 %v237, %v233
    %v286 = vpack.c.b16 %v238, %v234
    %v287 = vpack.c.b16 %v243, %v239
    %v288 = vpack.c.b16 %v244, %v240
    %v289 = vpack.c.b16 %v245, %v241
    %v290 = vpack.c.b16 %v246, %v242
    %v291 = vpack.c.b16 %v251, %v247
    %v292 = vpack.c.b16 %v252, %v248
    %v293 = vpack.c.b16 %v253, %v249
    %v294 = vpack.c.b16 %v254, %v250
    %v295 = vpack.c.b16 %v259, %v255
    %v296 = vpack.c.b16 %v260, %v256
    %v297 = vpack.c.b16 %v261, %v257
    %v298 = vpack.c.b16 %v262, %v258
    %v299 = vpack.c.b16 %v267, %v263
    %v300 = vpack.c.b16 %v268, %v264
    %v301 = vpack.c.b16 %v269, %v265
    %v302 = vpack.c.b16 %v270, %v266
    %335 = vmatprep.subr.bf16.mxu0 %v272
    %336 = vmatpush1.bf16.msra.mxu0 %v271
    %337 = vmatprep.subr.bf16.mxu0 %v276
    %338 = vmatpush1.bf16.msra.mxu0 %v275
    %339 = vmatprep.subr.bf16.mxu0 %v280
    %340 = vmatpush1.bf16.msra.mxu0 %v279
    %341 = vmatprep.subr.bf16.mxu0 %v284
    %342 = vmatpush1.bf16.msra.mxu0 %v283
    %343 = vmatprep.subr.bf16.mxu0 %v288
    %344 = vmatpush1.bf16.msra.mxu0 %v287
    %345 = vmatprep.subr.bf16.mxu0 %v292
    %346 = vmatpush1.bf16.msra.mxu0 %v291
    %347 = vmatprep.subr.bf16.mxu0 %v296
    %348 = vmatpush1.bf16.msra.mxu0 %v295
    %349 = vmatprep.subr.bf16.mxu0 %v300
    %350 = vmatpush1.bf16.msra.mxu0 %v299
    %351 = vmatprep.subr.bf16.mxu0 0
    %352 = vmatpush1.bf16.msra.mxu0 0
    %353 = vmatprep.subr.bf16.mxu0 0
    %354 = vmatpush1.bf16.msra.mxu0 0
    %355 = vmatprep.subr.bf16.mxu0 0
    %356 = vmatpush1.bf16.msra.mxu0 0
    %357 = vmatprep.subr.bf16.mxu0 0
    %358 = vmatpush1.bf16.msra.mxu0 0
    %359 = vmatprep.subr.bf16.mxu0 0
    %360 = vmatpush1.bf16.msra.mxu0 0
    %361 = vmatprep.subr.bf16.mxu0 0
    %362 = vmatpush1.bf16.msra.mxu0 0
    %363 = vmatprep.subr.bf16.mxu0 0
    %364 = vmatpush1.bf16.msra.mxu0 0
    %365 = vmatprep.subr.bf16.mxu0 0
    %366 = vmatpush1.bf16.msra.mxu0 0
    %367 = vmatprep.mubr.bf16.mxu0 0
    %368 = vmatmul.mubr.bf16.gmra.mrb[0].mxu0 %v142
    %v369 = vpop.f32.mrb[0].mxu0
    %v370 = vadd.f32 0.0, %v369
    %v371 = vpop.f32.mrb[0].mxu0
    %v372 = vadd.f32 0.0, %v371
    %v373 = vpop.f32.mrb[0].mxu0
    %v374 = vpop.f32.mrb[0].mxu0
    %375 = vdwg.mxu0
    %376 = vmatprep.subr.bf16.mxu0 %v274
    %377 = vmatpush1.bf16.msra.mxu0 %v273
    %378 = vmatprep.subr.bf16.mxu0 %v278
    %379 = vmatpush1.bf16.msra.mxu0 %v277
    %380 = vmatprep.subr.bf16.mxu0 %v282
    %381 = vmatpush1.bf16.msra.mxu0 %v281
    %382 = vmatprep.subr.bf16.mxu0 %v286
    %383 = vmatpush1.bf16.msra.mxu0 %v285
    %384 = vmatprep.subr.bf16.mxu0 %v290
    %385 = vmatpush1.bf16.msra.mxu0 %v289
    %386 = vmatprep.subr.bf16.mxu0 %v294
    %387 = vmatpush1.bf16.msra.mxu0 %v293
    %388 = vmatprep.subr.bf16.mxu0 %v298
    %389 = vmatpush1.bf16.msra.mxu0 %v297
    %390 = vmatprep.subr.bf16.mxu0 %v302
    %391 = vmatpush1.bf16.msra.mxu0 %v301
    %392 = vmatprep.subr.bf16.mxu0 0
    %393 = vmatpush1.bf16.msra.mxu0 0
    %394 = vmatprep.subr.bf16.mxu0 0
    %395 = vmatpush1.bf16.msra.mxu0 0
    %396 = vmatprep.subr.bf16.mxu0 0
    %397 = vmatpush1.bf16.msra.mxu0 0
    %398 = vmatprep.subr.bf16.mxu0 0
    %399 = vmatpush1.bf16.msra.mxu0 0
    %400 = vmatprep.subr.bf16.mxu0 0
    %401 = vmatpush1.bf16.msra.mxu0 0
    %402 = vmatprep.subr.bf16.mxu0 0
    %403 = vmatpush1.bf16.msra.mxu0 0
    %404 = vmatprep.subr.bf16.mxu0 0
    %405 = vmatpush1.bf16.msra.mxu0 0
    %406 = vmatprep.subr.bf16.mxu0 0
    %407 = vmatpush1.bf16.msra.mxu0 0
    %408 = vmatprep.mubr.bf16.mxu0 0
    %409 = vmatmul.mubr.bf16.gmra.mrb[0].mxu0 %v142
    %v410 = vpop.f32.mrb[0].mxu0
    %v411 = vadd.f32 0.0, %v410
    %v412 = vpop.f32.mrb[0].mxu0
    %v413 = vadd.f32 0.0, %v412
    %v414 = vpop.f32.mrb[0].mxu0
    %v415 = vpop.f32.mrb[0].mxu0
    %416 = vdwg.mxu0
    %v423 = vunpack.c.l.b16 %v134
    %v424 = vunpack.c.h.b16 %v134
    %v425 = vunpack.c.l.b16 %v135
    %v426 = vunpack.c.h.b16 %v135
    %v427 = vunpack.c.l.b16 %v136
    %v428 = vunpack.c.h.b16 %v136
    %v429 = vunpack.c.l.b16 %v137
    %v430 = vunpack.c.h.b16 %v137
    %v431 = vunpack.c.l.b16 %v138
    %v432 = vunpack.c.h.b16 %v138
    %v433 = vunpack.c.l.b16 %v139
    %v434 = vunpack.c.h.b16 %v139
    %v435 = vpack.c.b16 %v427, %v423
    %v436 = vpack.c.b16 %v428, %v424
    %v437 = vpack.c.b16 %v429, %v425
    %v438 = vpack.c.b16 %v430, %v426
    %v439 = vpack.c.b16 %v431, %v431
    %v440 = vpack.c.b16 %v432, %v432
    %v441 = vpack.c.b16 %v433, %v433
    %v442 = vpack.c.b16 %v434, %v434
    %vm447 = vcmask 195584
    %v449 = vsel %vm447, %v140, 0
    %v452 = vsel %vm60, %v439, 0
    %v455 = vsel %vm60, %v440, 0
    %v458 = vsel %vm60, %v441, 0
    %v461 = vsel %vm60, %v442, 0
    %463 = vmatprep.subr.bf16.mxu0 %v436
    %464 = vmatpush1.bf16.msra.mxu0 %v435
    %465 = vmatprep.subr.bf16.mxu0 %v455
    %466 = vmatpush1.bf16.msra.mxu0 %v452
    %467 = vmatprep.subr.bf16.mxu0 0
    %468 = vmatpush1.bf16.msra.mxu0 0
    %469 = vmatprep.subr.bf16.mxu0 0
    %470 = vmatpush1.bf16.msra.mxu0 0
    %471 = vmatprep.subr.bf16.mxu0 0
    %472 = vmatpush1.bf16.msra.mxu0 0
    %473 = vmatprep.subr.bf16.mxu0 0
    %474 = vmatpush1.bf16.msra.mxu0 0
    %475 = vmatprep.subr.bf16.mxu0 0
    %476 = vmatpush1.bf16.msra.mxu0 0
    %477 = vmatprep.subr.bf16.mxu0 0
    %478 = vmatpush1.bf16.msra.mxu0 0
    %479 = vmatprep.subr.bf16.mxu0 0
    %480 = vmatpush1.bf16.msra.mxu0 0
    %481 = vmatprep.subr.bf16.mxu0 0
    %482 = vmatpush1.bf16.msra.mxu0 0
    %483 = vmatprep.subr.bf16.mxu0 0
    %484 = vmatpush1.bf16.msra.mxu0 0
    %485 = vmatprep.subr.bf16.mxu0 0
    %486 = vmatpush1.bf16.msra.mxu0 0
    %487 = vmatprep.subr.bf16.mxu0 0
    %488 = vmatpush1.bf16.msra.mxu0 0
    %489 = vmatprep.subr.bf16.mxu0 0
    %490 = vmatpush1.bf16.msra.mxu0 0
    %491 = vmatprep.subr.bf16.mxu0 0
    %492 = vmatpush1.bf16.msra.mxu0 0
    %493 = vmatprep.subr.bf16.mxu0 0
    %494 = vmatpush1.bf16.msra.mxu0 0
    %495 = vmatprep.mubr.bf16.mxu0 0
    %496 = vmatmul.mubr.bf16.gmra.mrb[0].mxu0 %v449
    %v497 = vpop.f32.mrb[0].mxu0
    %v498 = vadd.f32 %v370, %v497
    %v499 = vpop.f32.mrb[0].mxu0
    %v500 = vadd.f32 %v372, %v499
    %v501 = vpop.f32.mrb[0].mxu0
    %v502 = vpop.f32.mrb[0].mxu0
    %503 = vdwg.mxu0
    %504 = vmatprep.subr.bf16.mxu0 %v438
    %505 = vmatpush1.bf16.msra.mxu0 %v437
    %506 = vmatprep.subr.bf16.mxu0 %v461
    %507 = vmatpush1.bf16.msra.mxu0 %v458
    %508 = vmatprep.subr.bf16.mxu0 0
    %509 = vmatpush1.bf16.msra.mxu0 0
    %510 = vmatprep.subr.bf16.mxu0 0
    %511 = vmatpush1.bf16.msra.mxu0 0
    %512 = vmatprep.subr.bf16.mxu0 0
    %513 = vmatpush1.bf16.msra.mxu0 0
    %514 = vmatprep.subr.bf16.mxu0 0
    %515 = vmatpush1.bf16.msra.mxu0 0
    %516 = vmatprep.subr.bf16.mxu0 0
    %517 = vmatpush1.bf16.msra.mxu0 0
    %518 = vmatprep.subr.bf16.mxu0 0
    %519 = vmatpush1.bf16.msra.mxu0 0
    %520 = vmatprep.subr.bf16.mxu0 0
    %521 = vmatpush1.bf16.msra.mxu0 0
    %522 = vmatprep.subr.bf16.mxu0 0
    %523 = vmatpush1.bf16.msra.mxu0 0
    %524 = vmatprep.subr.bf16.mxu0 0
    %525 = vmatpush1.bf16.msra.mxu0 0
    %526 = vmatprep.subr.bf16.mxu0 0
    %527 = vmatpush1.bf16.msra.mxu0 0
    %528 = vmatprep.subr.bf16.mxu0 0
    %529 = vmatpush1.bf16.msra.mxu0 0
    %530 = vmatprep.subr.bf16.mxu0 0
    %531 = vmatpush1.bf16.msra.mxu0 0
    %532 = vmatprep.subr.bf16.mxu0 0
    %533 = vmatpush1.bf16.msra.mxu0 0
    %534 = vmatprep.subr.bf16.mxu0 0
    %535 = vmatpush1.bf16.msra.mxu0 0
    %536 = vmatprep.mubr.bf16.mxu0 0
    %537 = vmatmul.mubr.bf16.gmra.mrb[0].mxu0 %v449
    %v538 = vpop.f32.mrb[0].mxu0
    %v539 = vadd.f32 %v411, %v538
    %v540 = vpop.f32.mrb[0].mxu0
    %v541 = vadd.f32 %v413, %v540
    %v542 = vpop.f32.mrb[0].mxu0
    %v543 = vpop.f32.mrb[0].mxu0
    %544 = vdwg.mxu0
    %v545 = vld [vmem:[%s6] sm:$0xf]
    %v547 = vlaneseq
    %v548 = vshrl.u32 %v547, 7
    %v549 = vsub.s32 0, %v548
    %v550 = vrot.slane %v545, %v549
    %v551 = vlaneseq
    %v552 = vshrl.u32 %v551, 7
    %v553 = vsub.s32 1, %v552
    %v554 = vrot.slane %v545, %v553
    %v555 = vlaneseq
    %v556 = vshrl.u32 %v555, 7
    %v557 = vsub.s32 2, %v556
    %v558 = vrot.slane %v545, %v557
    %v559 = vlaneseq
    %v560 = vshrl.u32 %v559, 7
    %v561 = vsub.s32 3, %v560
    %v562 = vrot.slane %v545, %v561
    %v567 = vadd.f32 %v498, %v550
    %v568 = vadd.f32 %v500, %v554
    %v569 = vadd.f32 %v539, %v558
    %v570 = vadd.f32 %v541, %v562
    %v571 = vxor.u32 %v567, 2147483648
    %v572 = vmul.f32 %v571, 1.442695
    %v573 = vpow.pop %v572
    %v574 = vadd.f32 %v573, 1.0
    %v575 = vrcp.pop %v574
    %v576 = vmul.f32 1.0, %v575
    %v577 = vxor.u32 %v568, 2147483648
    %v578 = vmul.f32 %v577, 1.442695
    %v579 = vpow.pop %v578
    %v580 = vadd.f32 %v579, 1.0
    %v581 = vrcp.pop %v580
    %v582 = vmul.f32 1.0, %v581
    %v583 = vtanh.pop %v569
    %v584 = vxor.u32 %v570, 2147483648
    %v585 = vmul.f32 %v584, 1.442695
    %v586 = vpow.pop %v585
    %v587 = vadd.f32 %v586, 1.0
    %v588 = vrcp.pop %v587
    %v589 = vmul.f32 1.0, %v588
    %v590 = vld [vmem:[%s3] sm:$0xff]
    %v591 = vmul.f32 %v582, %v590
    %v592 = vmul.f32 %v576, %v583
    %v593 = vadd.f32 %v591, %v592
    %v594 = vtanh.pop %v593
    %v595 = vmul.f32 %v589, %v594
    %596 = vst [vmem:[#allocation6] sm:$0xff] %v593
    %s597 = scalar_lea.vmem %s5, 512
    %v598 = vld [vmem:[%s597] sm:$0xff]
    %v599 = vld [vmem:[%s597 + $0x8] sm:$0xff]
    %v600 = vld [vmem:[%s597 + $0x10] sm:$0xff]
    %v601 = vld [vmem:[%s597 + $0x18] sm:$0xff]
    %v602 = vld [vmem:[%s597 + $0x20] sm:$0xff]
    %v603 = vld [vmem:[%s597 + $0x28] sm:$0xff]
    %v604 = vld [vmem:[%s597 + $0x30] sm:$0xff]
    %v605 = vld [vmem:[%s597 + $0x38] sm:$0xff]
    %v606 = vld [vmem:[%s597 + $0x40] sm:$0xff]
    %v607 = vld [vmem:[%s597 + $0x48] sm:$0xff]
    %v608 = vld [vmem:[%s597 + $0x50] sm:$0xff]
    %v609 = vld [vmem:[%s597 + $0x58] sm:$0xff]
    %v610 = vld [vmem:[%s597 + $0x60] sm:$0xff]
    %v611 = vld [vmem:[%s597 + $0x68] sm:$0xff]
    %v612 = vld [vmem:[%s597 + $0x70] sm:$0xff]
    %v613 = vld [vmem:[%s597 + $0x78] sm:$0xff]
    %v614 = vld [vmem:[%s597 + $0x80] sm:$0xff]
    %v615 = vld [vmem:[%s597 + $0x88] sm:$0xff]
    %v616 = vld [vmem:[%s597 + $0x90] sm:$0xff]
    %v617 = vld [vmem:[%s597 + $0x98] sm:$0xff]
    %v618 = vld [vmem:[%s597 + $0xa0] sm:$0xff]
    %v619 = vld [vmem:[%s597 + $0xa8] sm:$0xff]
    %v620 = vld [vmem:[%s597 + $0xb0] sm:$0xff]
    %v621 = vld [vmem:[%s597 + $0xb8] sm:$0xff]
    %v622 = vld [vmem:[%s597 + $0xc0] sm:$0xff]
    %v623 = vld [vmem:[%s597 + $0xc8] sm:$0xff]
    %v624 = vld [vmem:[%s597 + $0xd0] sm:$0xff]
    %v625 = vld [vmem:[%s597 + $0xd8] sm:$0xff]
    %v626 = vld [vmem:[%s597 + $0xe0] sm:$0xff]
    %v627 = vld [vmem:[%s597 + $0xe8] sm:$0xff]
    %v628 = vld [vmem:[%s597 + $0xf0] sm:$0xff]
    %v629 = vld [vmem:[%s597 + $0xf8] sm:$0xff]
    %v630 = vpack.c.bf16 %v595, %v595
    %s631 = scalar_lea.vmem %s2, 8
    %v632 = vld [vmem:[%s631] sm:$0xff]
    %v633 = vpack.c.bf16 %v632, %v632
    %s634 = scalar_lea.vmem %s5, 256
    %v635 = vld [vmem:[%s634] sm:$0xff]
    %v636 = vld [vmem:[%s634 + $0x8] sm:$0xff]
    %v637 = vld [vmem:[%s634 + $0x10] sm:$0xff]
    %v638 = vld [vmem:[%s634 + $0x18] sm:$0xff]
    %v639 = vld [vmem:[%s634 + $0x20] sm:$0xff]
    %v640 = vld [vmem:[%s634 + $0x28] sm:$0xff]
    %v641 = vld [vmem:[%s634 + $0x30] sm:$0xff]
    %v642 = vld [vmem:[%s634 + $0x38] sm:$0xff]
    %v643 = vld [vmem:[%s634 + $0x40] sm:$0xff]
    %v644 = vld [vmem:[%s634 + $0x48] sm:$0xff]
    %v645 = vld [vmem:[%s634 + $0x50] sm:$0xff]
    %v646 = vld [vmem:[%s634 + $0x58] sm:$0xff]
    %v647 = vld [vmem:[%s634 + $0x60] sm:$0xff]
    %v648 = vld [vmem:[%s634 + $0x68] sm:$0xff]
    %v649 = vld [vmem:[%s634 + $0x70] sm:$0xff]
    %v650 = vld [vmem:[%s634 + $0x78] sm:$0xff]
    %v651 = vld [vmem:[%s634 + $0x80] sm:$0xff]
    %v652 = vld [vmem:[%s634 + $0x88] sm:$0xff]
    %v653 = vld [vmem:[%s634 + $0x90] sm:$0xff]
    %v654 = vld [vmem:[%s634 + $0x98] sm:$0xff]
    %v655 = vld [vmem:[%s634 + $0xa0] sm:$0xff]
    %v656 = vld [vmem:[%s634 + $0xa8] sm:$0xff]
    %v657 = vld [vmem:[%s634 + $0xb0] sm:$0xff]
    %v658 = vld [vmem:[%s634 + $0xb8] sm:$0xff]
    %v659 = vld [vmem:[%s634 + $0xc0] sm:$0xff]
    %v660 = vld [vmem:[%s634 + $0xc8] sm:$0xff]
    %v661 = vld [vmem:[%s634 + $0xd0] sm:$0xff]
    %v662 = vld [vmem:[%s634 + $0xd8] sm:$0xff]
    %v663 = vld [vmem:[%s634 + $0xe0] sm:$0xff]
    %v664 = vld [vmem:[%s634 + $0xe8] sm:$0xff]
    %v665 = vld [vmem:[%s634 + $0xf0] sm:$0xff]
    %v666 = vld [vmem:[%s634 + $0xf8] sm:$0xff]
    %v699 = vunpack.c.l.b16 %v635
    %v700 = vunpack.c.h.b16 %v635
    %v701 = vunpack.c.l.b16 %v636
    %v702 = vunpack.c.h.b16 %v636
    %v703 = vunpack.c.l.b16 %v637
    %v704 = vunpack.c.h.b16 %v637
    %v705 = vunpack.c.l.b16 %v638
    %v706 = vunpack.c.h.b16 %v638
    %v707 = vunpack.c.l.b16 %v639
    %v708 = vunpack.c.h.b16 %v639
    %v709 = vunpack.c.l.b16 %v640
    %v710 = vunpack.c.h.b16 %v640
    %v711 = vunpack.c.l.b16 %v641
    %v712 = vunpack.c.h.b16 %v641
    %v713 = vunpack.c.l.b16 %v642
    %v714 = vunpack.c.h.b16 %v642
    %v715 = vunpack.c.l.b16 %v643
    %v716 = vunpack.c.h.b16 %v643
    %v717 = vunpack.c.l.b16 %v644
    %v718 = vunpack.c.h.b16 %v644
    %v719 = vunpack.c.l.b16 %v645
    %v720 = vunpack.c.h.b16 %v645
    %v721 = vunpack.c.l.b16 %v646
    %v722 = vunpack.c.h.b16 %v646
    %v723 = vunpack.c.l.b16 %v647
    %v724 = vunpack.c.h.b16 %v647
    %v725 = vunpack.c.l.b16 %v648
    %v726 = vunpack.c.h.b16 %v648
    %v727 = vunpack.c.l.b16 %v649
    %v728 = vunpack.c.h.b16 %v649
    %v729 = vunpack.c.l.b16 %v650
    %v730 = vunpack.c.h.b16 %v650
    %v731 = vunpack.c.l.b16 %v651
    %v732 = vunpack.c.h.b16 %v651
    %v733 = vunpack.c.l.b16 %v652
    %v734 = vunpack.c.h.b16 %v652
    %v735 = vunpack.c.l.b16 %v653
    %v736 = vunpack.c.h.b16 %v653
    %v737 = vunpack.c.l.b16 %v654
    %v738 = vunpack.c.h.b16 %v654
    %v739 = vunpack.c.l.b16 %v655
    %v740 = vunpack.c.h.b16 %v655
    %v741 = vunpack.c.l.b16 %v656
    %v742 = vunpack.c.h.b16 %v656
    %v743 = vunpack.c.l.b16 %v657
    %v744 = vunpack.c.h.b16 %v657
    %v745 = vunpack.c.l.b16 %v658
    %v746 = vunpack.c.h.b16 %v658
    %v747 = vunpack.c.l.b16 %v659
    %v748 = vunpack.c.h.b16 %v659
    %v749 = vunpack.c.l.b16 %v660
    %v750 = vunpack.c.h.b16 %v660
    %v751 = vunpack.c.l.b16 %v661
    %v752 = vunpack.c.h.b16 %v661
    %v753 = vunpack.c.l.b16 %v662
    %v754 = vunpack.c.h.b16 %v662
    %v755 = vunpack.c.l.b16 %v663
    %v756 = vunpack.c.h.b16 %v663
    %v757 = vunpack.c.l.b16 %v664
    %v758 = vunpack.c.h.b16 %v664
    %v759 = vunpack.c.l.b16 %v665
    %v760 = vunpack.c.h.b16 %v665
    %v761 = vunpack.c.l.b16 %v666
    %v762 = vunpack.c.h.b16 %v666
    %v763 = vpack.c.b16 %v703, %v699
    %v764 = vpack.c.b16 %v704, %v700
    %v765 = vpack.c.b16 %v705, %v701
    %v766 = vpack.c.b16 %v706, %v702
    %v767 = vpack.c.b16 %v711, %v707
    %v768 = vpack.c.b16 %v712, %v708
    %v769 = vpack.c.b16 %v713, %v709
    %v770 = vpack.c.b16 %v714, %v710
    %v771 = vpack.c.b16 %v719, %v715
    %v772 = vpack.c.b16 %v720, %v716
    %v773 = vpack.c.b16 %v721, %v717
    %v774 = vpack.c.b16 %v722, %v718
    %v775 = vpack.c.b16 %v727, %v723
    %v776 = vpack.c.b16 %v728, %v724
    %v777 = vpack.c.b16 %v729, %v725
    %v778 = vpack.c.b16 %v730, %v726
    %v779 = vpack.c.b16 %v735, %v731
    %v780 = vpack.c.b16 %v736, %v732
    %v781 = vpack.c.b16 %v737, %v733
    %v782 = vpack.c.b16 %v738, %v734
    %v783 = vpack.c.b16 %v743, %v739
    %v784 = vpack.c.b16 %v744, %v740
    %v785 = vpack.c.b16 %v745, %v741
    %v786 = vpack.c.b16 %v746, %v742
    %v787 = vpack.c.b16 %v751, %v747
    %v788 = vpack.c.b16 %v752, %v748
    %v789 = vpack.c.b16 %v753, %v749
    %v790 = vpack.c.b16 %v754, %v750
    %v791 = vpack.c.b16 %v759, %v755
    %v792 = vpack.c.b16 %v760, %v756
    %v793 = vpack.c.b16 %v761, %v757
    %v794 = vpack.c.b16 %v762, %v758
    %827 = vmatprep.subr.bf16.mxu0 %v764
    %828 = vmatpush1.bf16.msra.mxu0 %v763
    %829 = vmatprep.subr.bf16.mxu0 %v768
    %830 = vmatpush1.bf16.msra.mxu0 %v767
    %831 = vmatprep.subr.bf16.mxu0 %v772
    %832 = vmatpush1.bf16.msra.mxu0 %v771
    %833 = vmatprep.subr.bf16.mxu0 %v776
    %834 = vmatpush1.bf16.msra.mxu0 %v775
    %835 = vmatprep.subr.bf16.mxu0 %v780
    %836 = vmatpush1.bf16.msra.mxu0 %v779
    %837 = vmatprep.subr.bf16.mxu0 %v784
    %838 = vmatpush1.bf16.msra.mxu0 %v783
    %839 = vmatprep.subr.bf16.mxu0 %v788
    %840 = vmatpush1.bf16.msra.mxu0 %v787
    %841 = vmatprep.subr.bf16.mxu0 %v792
    %842 = vmatpush1.bf16.msra.mxu0 %v791
    %843 = vmatprep.subr.bf16.mxu0 0
    %844 = vmatpush1.bf16.msra.mxu0 0
    %845 = vmatprep.subr.bf16.mxu0 0
    %846 = vmatpush1.bf16.msra.mxu0 0
    %847 = vmatprep.subr.bf16.mxu0 0
    %848 = vmatpush1.bf16.msra.mxu0 0
    %849 = vmatprep.subr.bf16.mxu0 0
    %850 = vmatpush1.bf16.msra.mxu0 0
    %851 = vmatprep.subr.bf16.mxu0 0
    %852 = vmatpush1.bf16.msra.mxu0 0
    %853 = vmatprep.subr.bf16.mxu0 0
    %854 = vmatpush1.bf16.msra.mxu0 0
    %855 = vmatprep.subr.bf16.mxu0 0
    %856 = vmatpush1.bf16.msra.mxu0 0
    %857 = vmatprep.subr.bf16.mxu0 0
    %858 = vmatpush1.bf16.msra.mxu0 0
    %859 = vmatprep.mubr.bf16.mxu0 0
    %860 = vmatmul.mubr.bf16.gmra.mrb[0].mxu0 %v633
    %v861 = vpop.f32.mrb[0].mxu0
    %v862 = vadd.f32 0.0, %v861
    %v863 = vpop.f32.mrb[0].mxu0
    %v864 = vadd.f32 0.0, %v863
    %v865 = vpop.f32.mrb[0].mxu0
    %v866 = vpop.f32.mrb[0].mxu0
    %867 = vdwg.mxu0
    %868 = vmatprep.subr.bf16.mxu0 %v766
    %869 = vmatpush1.bf16.msra.mxu0 %v765
    %870 = vmatprep.subr.bf16.mxu0 %v770
    %871 = vmatpush1.bf16.msra.mxu0 %v769
    %872 = vmatprep.subr.bf16.mxu0 %v774
    %873 = vmatpush1.bf16.msra.mxu0 %v773
    %874 = vmatprep.subr.bf16.mxu0 %v778
    %875 = vmatpush1.bf16.msra.mxu0 %v777
    %876 = vmatprep.subr.bf16.mxu0 %v782
    %877 = vmatpush1.bf16.msra.mxu0 %v781
    %878 = vmatprep.subr.bf16.mxu0 %v786
    %879 = vmatpush1.bf16.msra.mxu0 %v785
    %880 = vmatprep.subr.bf16.mxu0 %v790
    %881 = vmatpush1.bf16.msra.mxu0 %v789
    %882 = vmatprep.subr.bf16.mxu0 %v794
    %883 = vmatpush1.bf16.msra.mxu0 %v793
    %884 = vmatprep.subr.bf16.mxu0 0
    %885 = vmatpush1.bf16.msra.mxu0 0
    %886 = vmatprep.subr.bf16.mxu0 0
    %887 = vmatpush1.bf16.msra.mxu0 0
    %888 = vmatprep.subr.bf16.mxu0 0
    %889 = vmatpush1.bf16.msra.mxu0 0
    %890 = vmatprep.subr.bf16.mxu0 0
    %891 = vmatpush1.bf16.msra.mxu0 0
    %892 = vmatprep.subr.bf16.mxu0 0
    %893 = vmatpush1.bf16.msra.mxu0 0
    %894 = vmatprep.subr.bf16.mxu0 0
    %895 = vmatpush1.bf16.msra.mxu0 0
    %896 = vmatprep.subr.bf16.mxu0 0
    %897 = vmatpush1.bf16.msra.mxu0 0
    %898 = vmatprep.subr.bf16.mxu0 0
    %899 = vmatpush1.bf16.msra.mxu0 0
    %900 = vmatprep.mubr.bf16.mxu0 0
    %901 = vmatmul.mubr.bf16.gmra.mrb[0].mxu0 %v633
    %v902 = vpop.f32.mrb[0].mxu0
    %v903 = vadd.f32 0.0, %v902
    %v904 = vpop.f32.mrb[0].mxu0
    %v905 = vadd.f32 0.0, %v904
    %v906 = vpop.f32.mrb[0].mxu0
    %v907 = vpop.f32.mrb[0].mxu0
    %908 = vdwg.mxu0
    %v941 = vunpack.c.l.b16 %v598
    %v942 = vunpack.c.h.b16 %v598
    %v943 = vunpack.c.l.b16 %v599
    %v944 = vunpack.c.h.b16 %v599
    %v945 = vunpack.c.l.b16 %v600
    %v946 = vunpack.c.h.b16 %v600
    %v947 = vunpack.c.l.b16 %v601
    %v948 = vunpack.c.h.b16 %v601
    %v949 = vunpack.c.l.b16 %v602
    %v950 = vunpack.c.h.b16 %v602
    %v951 = vunpack.c.l.b16 %v603
    %v952 = vunpack.c.h.b16 %v603
    %v953 = vunpack.c.l.b16 %v604
    %v954 = vunpack.c.h.b16 %v604
    %v955 = vunpack.c.l.b16 %v605
    %v956 = vunpack.c.h.b16 %v605
    %v957 = vunpack.c.l.b16 %v606
    %v958 = vunpack.c.h.b16 %v606
    %v959 = vunpack.c.l.b16 %v607
    %v960 = vunpack.c.h.b16 %v607
    %v961 = vunpack.c.l.b16 %v608
    %v962 = vunpack.c.h.b16 %v608
    %v963 = vunpack.c.l.b16 %v609
    %v964 = vunpack.c.h.b16 %v609
    %v965 = vunpack.c.l.b16 %v610
    %v966 = vunpack.c.h.b16 %v610
    %v967 = vunpack.c.l.b16 %v611
    %v968 = vunpack.c.h.b16 %v611
    %v969 = vunpack.c.l.b16 %v612
    %v970 = vunpack.c.h.b16 %v612
    %v971 = vunpack.c.l.b16 %v613
    %v972 = vunpack.c.h.b16 %v613
    %v973 = vunpack.c.l.b16 %v614
    %v974 = vunpack.c.h.b16 %v614
    %v975 = vunpack.c.l.b16 %v615
    %v976 = vunpack.c.h.b16 %v615
    %v977 = vunpack.c.l.b16 %v616
    %v978 = vunpack.c.h.b16 %v616
    %v979 = vunpack.c.l.b16 %v617
    %v980 = vunpack.c.h.b16 %v617
    %v981 = vunpack.c.l.b16 %v618
    %v982 = vunpack.c.h.b16 %v618
    %v983 = vunpack.c.l.b16 %v619
    %v984 = vunpack.c.h.b16 %v619
    %v985 = vunpack.c.l.b16 %v620
    %v986 = vunpack.c.h.b16 %v620
    %v987 = vunpack.c.l.b16 %v621
    %v988 = vunpack.c.h.b16 %v621
    %v989 = vunpack.c.l.b16 %v622
    %v990 = vunpack.c.h.b16 %v622
    %v991 = vunpack.c.l.b16 %v623
    %v992 = vunpack.c.h.b16 %v623
    %v993 = vunpack.c.l.b16 %v624
    %v994 = vunpack.c.h.b16 %v624
    %v995 = vunpack.c.l.b16 %v625
    %v996 = vunpack.c.h.b16 %v625
    %v997 = vunpack.c.l.b16 %v626
    %v998 = vunpack.c.h.b16 %v626
    %v999 = vunpack.c.l.b16 %v627
    %v1000 = vunpack.c.h.b16 %v627
    %v1001 = vunpack.c.l.b16 %v628
    %v1002 = vunpack.c.h.b16 %v628
    %v1003 = vunpack.c.l.b16 %v629
    %v1004 = vunpack.c.h.b16 %v629
    %v1005 = vpack.c.b16 %v945, %v941
    %v1006 = vpack.c.b16 %v946, %v942
    %v1007 = vpack.c.b16 %v947, %v943
    %v1008 = vpack.c.b16 %v948, %v944
    %v1009 = vpack.c.b16 %v953, %v949
    %v1010 = vpack.c.b16 %v954, %v950
    %v1011 = vpack.c.b16 %v955, %v951
    %v1012 = vpack.c.b16 %v956, %v952
    %v1013 = vpack.c.b16 %v961, %v957
    %v1014 = vpack.c.b16 %v962, %v958
    %v1015 = vpack.c.b16 %v963, %v959
    %v1016 = vpack.c.b16 %v964, %v960
    %v1017 = vpack.c.b16 %v969, %v965
    %v1018 = vpack.c.b16 %v970, %v966
    %v1019 = vpack.c.b16 %v971, %v967
    %v1020 = vpack.c.b16 %v972, %v968
    %v1021 = vpack.c.b16 %v977, %v973
    %v1022 = vpack.c.b16 %v978, %v974
    %v1023 = vpack.c.b16 %v979, %v975
    %v1024 = vpack.c.b16 %v980, %v976
    %v1025 = vpack.c.b16 %v985, %v981
    %v1026 = vpack.c.b16 %v986, %v982
    %v1027 = vpack.c.b16 %v987, %v983
    %v1028 = vpack.c.b16 %v988, %v984
    %v1029 = vpack.c.b16 %v993, %v989
    %v1030 = vpack.c.b16 %v994, %v990
    %v1031 = vpack.c.b16 %v995, %v991
    %v1032 = vpack.c.b16 %v996, %v992
    %v1033 = vpack.c.b16 %v1001, %v997
    %v1034 = vpack.c.b16 %v1002, %v998
    %v1035 = vpack.c.b16 %v1003, %v999
    %v1036 = vpack.c.b16 %v1004, %v1000
    %1069 = vmatprep.subr.bf16.mxu0 %v1006
    %1070 = vmatpush1.bf16.msra.mxu0 %v1005
    %1071 = vmatprep.subr.bf16.mxu0 %v1010
    %1072 = vmatpush1.bf16.msra.mxu0 %v1009
    %1073 = vmatprep.subr.bf16.mxu0 %v1014
    %1074 = vmatpush1.bf16.msra.mxu0 %v1013
    %1075 = vmatprep.subr.bf16.mxu0 %v1018
    %1076 = vmatpush1.bf16.msra.mxu0 %v1017
    %1077 = vmatprep.subr.bf16.mxu0 %v1022
    %1078 = vmatpush1.bf16.msra.mxu0 %v1021
    %1079 = vmatprep.subr.bf16.mxu0 %v1026
    %1080 = vmatpush1.bf16.msra.mxu0 %v1025
    %1081 = vmatprep.subr.bf16.mxu0 %v1030
    %1082 = vmatpush1.bf16.msra.mxu0 %v1029
    %1083 = vmatprep.subr.bf16.mxu0 %v1034
    %1084 = vmatpush1.bf16.msra.mxu0 %v1033
    %1085 = vmatprep.subr.bf16.mxu0 0
    %1086 = vmatpush1.bf16.msra.mxu0 0
    %1087 = vmatprep.subr.bf16.mxu0 0
    %1088 = vmatpush1.bf16.msra.mxu0 0
    %1089 = vmatprep.subr.bf16.mxu0 0
    %1090 = vmatpush1.bf16.msra.mxu0 0
    %1091 = vmatprep.subr.bf16.mxu0 0
    %1092 = vmatpush1.bf16.msra.mxu0 0
    %1093 = vmatprep.subr.bf16.mxu0 0
    %1094 = vmatpush1.bf16.msra.mxu0 0
    %1095 = vmatprep.subr.bf16.mxu0 0
    %1096 = vmatpush1.bf16.msra.mxu0 0
    %1097 = vmatprep.subr.bf16.mxu0 0
    %1098 = vmatpush1.bf16.msra.mxu0 0
    %1099 = vmatprep.subr.bf16.mxu0 0
    %1100 = vmatpush1.bf16.msra.mxu0 0
    %1101 = vmatprep.mubr.bf16.mxu0 0
    %1102 = vmatmul.mubr.bf16.gmra.mrb[0].mxu0 %v630
    %v1103 = vpop.f32.mrb[0].mxu0
    %v1104 = vadd.f32 %v862, %v1103
    %v1105 = vpop.f32.mrb[0].mxu0
    %v1106 = vadd.f32 %v864, %v1105
    %v1107 = vpop.f32.mrb[0].mxu0
    %v1108 = vpop.f32.mrb[0].mxu0
    %1109 = vdwg.mxu0
    %1110 = vmatprep.subr.bf16.mxu0 %v1008
    %1111 = vmatpush1.bf16.msra.mxu0 %v1007
    %1112 = vmatprep.subr.bf16.mxu0 %v1012
    %1113 = vmatpush1.bf16.msra.mxu0 %v1011
    %1114 = vmatprep.subr.bf16.mxu0 %v1016
    %1115 = vmatpush1.bf16.msra.mxu0 %v1015
    %1116 = vmatprep.subr.bf16.mxu0 %v1020
    %1117 = vmatpush1.bf16.msra.mxu0 %v1019
    %1118 = vmatprep.subr.bf16.mxu0 %v1024
    %1119 = vmatpush1.bf16.msra.mxu0 %v1023
    %1120 = vmatprep.subr.bf16.mxu0 %v1028
    %1121 = vmatpush1.bf16.msra.mxu0 %v1027
    %1122 = vmatprep.subr.bf16.mxu0 %v1032
    %1123 = vmatpush1.bf16.msra.mxu0 %v1031
    %1124 = vmatprep.subr.bf16.mxu0 %v1036
    %1125 = vmatpush1.bf16.msra.mxu0 %v1035
    %1126 = vmatprep.subr.bf16.mxu0 0
    %1127 = vmatpush1.bf16.msra.mxu0 0
    %1128 = vmatprep.subr.bf16.mxu0 0
    %1129 = vmatpush1.bf16.msra.mxu0 0
    %1130 = vmatprep.subr.bf16.mxu0 0
    %1131 = vmatpush1.bf16.msra.mxu0 0
    %1132 = vmatprep.subr.bf16.mxu0 0
    %1133 = vmatpush1.bf16.msra.mxu0 0
    %1134 = vmatprep.subr.bf16.mxu0 0
    %1135 = vmatpush1.bf16.msra.mxu0 0
    %1136 = vmatprep.subr.bf16.mxu0 0
    %1137 = vmatpush1.bf16.msra.mxu0 0
    %1138 = vmatprep.subr.bf16.mxu0 0
    %1139 = vmatpush1.bf16.msra.mxu0 0
    %1140 = vmatprep.subr.bf16.mxu0 0
    %1141 = vmatpush1.bf16.msra.mxu0 0
    %1142 = vmatprep.mubr.bf16.mxu0 0
    %1143 = vmatmul.mubr.bf16.gmra.mrb[0].mxu0 %v630
    %v1144 = vpop.f32.mrb[0].mxu0
    %v1145 = vadd.f32 %v903, %v1144
    %v1146 = vpop.f32.mrb[0].mxu0
    %v1147 = vadd.f32 %v905, %v1146
    %v1148 = vpop.f32.mrb[0].mxu0
    %v1149 = vpop.f32.mrb[0].mxu0
    %1150 = vdwg.mxu0
    %s1151 = scalar_lea.vmem %s6, 4
    %v1152 = vld [vmem:[%s1151] sm:$0xf]
    %v1154 = vlaneseq
    %v1155 = vshrl.u32 %v1154, 7
    %v1156 = vsub.s32 0, %v1155
    %v1157 = vrot.slane %v1152, %v1156
    %v1158 = vlaneseq
    %v1159 = vshrl.u32 %v1158, 7
    %v1160 = vsub.s32 1, %v1159
    %v1161 = vrot.slane %v1152, %v1160
    %v1162 = vlaneseq
    %v1163 = vshrl.u32 %v1162, 7
    %v1164 = vsub.s32 2, %v1163
    %v1165 = vrot.slane %v1152, %v1164
    %v1166 = vlaneseq
    %v1167 = vshrl.u32 %v1166, 7
    %v1168 = vsub.s32 3, %v1167
    %v1169 = vrot.slane %v1152, %v1168
    %v1174 = vadd.f32 %v1104, %v1157
    %v1175 = vadd.f32 %v1106, %v1161
    %v1176 = vadd.f32 %v1145, %v1165
    %v1177 = vadd.f32 %v1147, %v1169
    %v1178 = vxor.u32 %v1174, 2147483648
    %v1179 = vmul.f32 %v1178, 1.442695
    %v1180 = vpow.pop %v1179
    %v1181 = vadd.f32 %v1180, 1.0
    %v1182 = vrcp.pop %v1181
    %v1183 = vmul.f32 1.0, %v1182
    %v1184 = vxor.u32 %v1175, 2147483648
    %v1185 = vmul.f32 %v1184, 1.442695
    %v1186 = vpow.pop %v1185
    %v1187 = vadd.f32 %v1186, 1.0
    %v1188 = vrcp.pop %v1187
    %v1189 = vmul.f32 1.0, %v1188
    %v1190 = vtanh.pop %v1176
    %v1191 = vxor.u32 %v1177, 2147483648
    %v1192 = vmul.f32 %v1191, 1.442695
    %v1193 = vpow.pop %v1192
    %v1194 = vadd.f32 %v1193, 1.0
    %v1195 = vrcp.pop %v1194
    %v1196 = vmul.f32 1.0, %v1195
    %s1197 = scalar_lea.vmem %s3, 8
    %v1198 = vld [vmem:[%s1197] sm:$0xff]
    %v1199 = vmul.f32 %v1189, %v1198
    %v1200 = vmul.f32 %v1183, %v1190
    %v1201 = vadd.f32 %v1199, %v1200
    %v1202 = vtanh.pop %v1201
    %v1203 = vmul.f32 %v1196, %v1202
    %s1204 = scalar_lea.vmem [#allocation6], 8
    %1205 = vst [vmem:[%s1204] sm:$0xff] %v1201
    %v1206 = vpack.c.bf16 %v1203, %v595
    %v1207 = vld [vmem:[%s7] sm:$0xf]
    %v1208 = vld [vmem:[%s7 + $0x4] sm:$0xf]
    %v1209 = vld [vmem:[%s7 + $0x8] sm:$0xf]
    %v1210 = vld [vmem:[%s7 + $0xc] sm:$0xf]
    %v1211 = vld [vmem:[%s7 + $0x10] sm:$0xf]
    %v1212 = vld [vmem:[%s7 + $0x14] sm:$0xf]
    %v1213 = vld [vmem:[%s7 + $0x18] sm:$0xf]
    %v1214 = vld [vmem:[%s7 + $0x1c] sm:$0xf]
    %v1215 = vld [vmem:[%s7 + $0x20] sm:$0xf]
    %v1216 = vld [vmem:[%s7 + $0x24] sm:$0xf]
    %v1217 = vld [vmem:[%s7 + $0x28] sm:$0xf]
    %v1218 = vld [vmem:[%s7 + $0x2c] sm:$0xf]
    %v1219 = vld [vmem:[%s7 + $0x30] sm:$0xf]
    %v1220 = vld [vmem:[%s7 + $0x34] sm:$0xf]
    %v1221 = vld [vmem:[%s7 + $0x38] sm:$0xf]
    %v1222 = vld [vmem:[%s7 + $0x3c] sm:$0xf]
    %v1223 = vld [vmem:[%s8] sm:$0x1]
    %v1225 = vlaneseq
    %v1226 = vshrl.u32 %v1225, 7
    %v1227 = vsub.s32 0, %v1226
    %v1228 = vrot.slane %v1223, %v1227
    %v1246 = vunpack.c.l.b16 %v1207
    %v1247 = vunpack.c.l.b16 %v1208
    %v1248 = vunpack.c.l.b16 %v1209
    %v1249 = vunpack.c.l.b16 %v1210
    %v1250 = vunpack.c.l.b16 %v1211
    %v1251 = vunpack.c.l.b16 %v1212
    %v1252 = vunpack.c.l.b16 %v1213
    %v1253 = vunpack.c.l.b16 %v1214
    %v1254 = vunpack.c.l.b16 %v1215
    %v1255 = vunpack.c.l.b16 %v1216
    %v1256 = vunpack.c.l.b16 %v1217
    %v1257 = vunpack.c.l.b16 %v1218
    %v1258 = vunpack.c.l.b16 %v1219
    %v1259 = vunpack.c.l.b16 %v1220
    %v1260 = vunpack.c.l.b16 %v1221
    %v1261 = vunpack.c.l.b16 %v1222
    %v1262 = vpack.c.b16 %v1247, %v1246
    %v1263 = vpack.c.b16 %v1249, %v1248
    %v1264 = vpack.c.b16 %v1251, %v1250
    %v1265 = vpack.c.b16 %v1253, %v1252
    %v1266 = vpack.c.b16 %v1255, %v1254
    %v1267 = vpack.c.b16 %v1257, %v1256
    %v1268 = vpack.c.b16 %v1259, %v1258
    %v1269 = vpack.c.b16 %v1261, %v1260
    %1278 = vmatprep.subr.bf16.mxu0 0
    %1279 = vmatpush1.bf16.msra.mxu0 %v1262
    %1280 = vmatprep.subr.bf16.mxu0 0
    %1281 = vmatpush1.bf16.msra.mxu0 %v1263
    %1282 = vmatprep.subr.bf16.mxu0 0
    %1283 = vmatpush1.bf16.msra.mxu0 %v1264
    %1284 = vmatprep.subr.bf16.mxu0 0
    %1285 = vmatpush1.bf16.msra.mxu0 %v1265
    %1286 = vmatprep.subr.bf16.mxu0 0
    %1287 = vmatpush1.bf16.msra.mxu0 %v1266
    %1288 = vmatprep.subr.bf16.mxu0 0
    %1289 = vmatpush1.bf16.msra.mxu0 %v1267
    %1290 = vmatprep.subr.bf16.mxu0 0
    %1291 = vmatpush1.bf16.msra.mxu0 %v1268
    %1292 = vmatprep.subr.bf16.mxu0 0
    %1293 = vmatpush1.bf16.msra.mxu0 %v1269
    %1294 = vmatprep.subr.bf16.mxu0 0
    %1295 = vmatpush1.bf16.msra.mxu0 0
    %1296 = vmatprep.subr.bf16.mxu0 0
    %1297 = vmatpush1.bf16.msra.mxu0 0
    %1298 = vmatprep.subr.bf16.mxu0 0
    %1299 = vmatpush1.bf16.msra.mxu0 0
    %1300 = vmatprep.subr.bf16.mxu0 0
    %1301 = vmatpush1.bf16.msra.mxu0 0
    %1302 = vmatprep.subr.bf16.mxu0 0
    %1303 = vmatpush1.bf16.msra.mxu0 0
    %1304 = vmatprep.subr.bf16.mxu0 0
    %1305 = vmatpush1.bf16.msra.mxu0 0
    %1306 = vmatprep.subr.bf16.mxu0 0
    %1307 = vmatpush1.bf16.msra.mxu0 0
    %1308 = vmatprep.subr.bf16.mxu0 0
    %1309 = vmatpush1.bf16.msra.mxu0 0
    %1310 = vmatprep.mubr.bf16.mxu0 0
    %1311 = vmatmul.mubr.bf16.gmra.mrb[0].mxu0 %v1206
    %v1312 = vpop.f32.mrb[0].mxu0
    %v1313 = vadd.f32 %v1228, %v1312
    %v1314 = vpop.f32.mrb[0].mxu0
    %v1315 = vpop.f32.mrb[0].mxu0
    %v1316 = vadd.f32 %v1228, %v1315
    %v1317 = vpop.f32.mrb[0].mxu0
    %1318 = vdwg.mxu0
    %1319 = vst [vmem:[#allocation4] sm:$0xff] %v1313
    %1320 = vst [vmem:[#allocation4 + $0x8] sm:$0xff] %v1316
    %v1321 = vpack.c.bf16 %v1203, %v1203
    %v1322 = vld [vmem:[%s9] sm:$0xf]
    %v1323 = vld [vmem:[%s9 + $0x4] sm:$0xf]
    %v1324 = vld [vmem:[%s9 + $0x8] sm:$0xf]
    %v1325 = vld [vmem:[%s9 + $0xc] sm:$0xf]
    %v1326 = vld [vmem:[%s9 + $0x10] sm:$0xf]
    %v1327 = vld [vmem:[%s9 + $0x14] sm:$0xf]
    %v1328 = vld [vmem:[%s9 + $0x18] sm:$0xf]
    %v1329 = vld [vmem:[%s9 + $0x1c] sm:$0xf]
    %v1330 = vld [vmem:[%s9 + $0x20] sm:$0xf]
    %v1331 = vld [vmem:[%s9 + $0x24] sm:$0xf]
    %v1332 = vld [vmem:[%s9 + $0x28] sm:$0xf]
    %v1333 = vld [vmem:[%s9 + $0x2c] sm:$0xf]
    %v1334 = vld [vmem:[%s9 + $0x30] sm:$0xf]
    %v1335 = vld [vmem:[%s9 + $0x34] sm:$0xf]
    %v1336 = vld [vmem:[%s9 + $0x38] sm:$0xf]
    %v1337 = vld [vmem:[%s9 + $0x3c] sm:$0xf]
    %v1338 = vld [vmem:[%s10] sm:$0x1]
    %v1340 = vlaneseq
    %v1341 = vshrl.u32 %v1340, 7
    %v1342 = vsub.s32 0, %v1341
    %v1343 = vrot.slane %v1338, %v1342
    %v1361 = vunpack.c.l.b16 %v1322
    %v1362 = vunpack.c.l.b16 %v1323
    %v1363 = vunpack.c.l.b16 %v1324
    %v1364 = vunpack.c.l.b16 %v1325
    %v1365 = vunpack.c.l.b16 %v1326
    %v1366 = vunpack.c.l.b16 %v1327
    %v1367 = vunpack.c.l.b16 %v1328
    %v1368 = vunpack.c.l.b16 %v1329
    %v1369 = vunpack.c.l.b16 %v1330
    %v1370 = vunpack.c.l.b16 %v1331
    %v1371 = vunpack.c.l.b16 %v1332
    %v1372 = vunpack.c.l.b16 %v1333
    %v1373 = vunpack.c.l.b16 %v1334
    %v1374 = vunpack.c.l.b16 %v1335
    %v1375 = vunpack.c.l.b16 %v1336
    %v1376 = vunpack.c.l.b16 %v1337
    %v1377 = vpack.c.b16 %v1362, %v1361
    %v1378 = vpack.c.b16 %v1364, %v1363
    %v1379 = vpack.c.b16 %v1366, %v1365
    %v1380 = vpack.c.b16 %v1368, %v1367
    %v1381 = vpack.c.b16 %v1370, %v1369
    %v1382 = vpack.c.b16 %v1372, %v1371
    %v1383 = vpack.c.b16 %v1374, %v1373
    %v1384 = vpack.c.b16 %v1376, %v1375
    %1393 = vmatprep.subr.bf16.mxu0 0
    %1394 = vmatpush1.bf16.msra.mxu0 %v1377
    %1395 = vmatprep.subr.bf16.mxu0 0
    %1396 = vmatpush1.bf16.msra.mxu0 %v1378
    %1397 = vmatprep.subr.bf16.mxu0 0
    %1398 = vmatpush1.bf16.msra.mxu0 %v1379
    %1399 = vmatprep.subr.bf16.mxu0 0
    %1400 = vmatpush1.bf16.msra.mxu0 %v1380
    %1401 = vmatprep.subr.bf16.mxu0 0
    %1402 = vmatpush1.bf16.msra.mxu0 %v1381
    %1403 = vmatprep.subr.bf16.mxu0 0
    %1404 = vmatpush1.bf16.msra.mxu0 %v1382
    %1405 = vmatprep.subr.bf16.mxu0 0
    %1406 = vmatpush1.bf16.msra.mxu0 %v1383
    %1407 = vmatprep.subr.bf16.mxu0 0
    %1408 = vmatpush1.bf16.msra.mxu0 %v1384
    %1409 = vmatprep.subr.bf16.mxu0 0
    %1410 = vmatpush1.bf16.msra.mxu0 0
    %1411 = vmatprep.subr.bf16.mxu0 0
    %1412 = vmatpush1.bf16.msra.mxu0 0
    %1413 = vmatprep.subr.bf16.mxu0 0
    %1414 = vmatpush1.bf16.msra.mxu0 0
    %1415 = vmatprep.subr.bf16.mxu0 0
    %1416 = vmatpush1.bf16.msra.mxu0 0
    %1417 = vmatprep.subr.bf16.mxu0 0
    %1418 = vmatpush1.bf16.msra.mxu0 0
    %1419 = vmatprep.subr.bf16.mxu0 0
    %1420 = vmatpush1.bf16.msra.mxu0 0
    %1421 = vmatprep.subr.bf16.mxu0 0
    %1422 = vmatpush1.bf16.msra.mxu0 0
    %1423 = vmatprep.subr.bf16.mxu0 0
    %1424 = vmatpush1.bf16.msra.mxu0 0
    %1425 = vmatprep.mubr.bf16.mxu0 0
    %1426 = vmatmul.mubr.bf16.gmra.mrb[0].mxu0 %v1321
    %v1427 = vpop.f32.mrb[0].mxu0
    %v1428 = vadd.f32 %v1343, %v1427
    %v1429 = vpop.f32.mrb[0].mxu0
    %v1430 = vpop.f32.mrb[0].mxu0
    %v1431 = vpop.f32.mrb[0].mxu0
    %1432 = vdwg.mxu0
    %1433 = vst [vmem:[#allocation2] sm:$0xff] %v1428
    // Predicated region
    $region46: #{decoder_forward.1} parent=1 // pred_check
      _
    $region47: #{decoder_forward.1} parent=1 // pred_check_branch
      %1435 = sbr.rel (0) target = $region49
    $region48: #{decoder_forward.1} parent=1 // pred_region
      %s1437 = ssub.s32 128, 128
      %1438 = vsyncadd [#allocation3], %s1437
      %s1440 = sshll.u32 [#allocation2], 4
      %s1441 = int_to_ptr.vmem [resolvable:$true] %s1440
      %1443 = dma.vmem_to_hbm [thread:$0]  %s1441, 128, %s11, [#allocation3]
    $region49: #{decoder_forward.1} parent=1 // pred_fallthru
      _
    // Predicated region
    $region50: #{decoder_forward.1} parent=1 // pred_check
      _
    $region51: #{decoder_forward.1} parent=1 // pred_check_branch
      %1445 = sbr.rel (0) target = $region53
    $region52: #{decoder_forward.1} parent=1 // pred_region
      %s1447 = ssub.s32 256, 256
      %1448 = vsyncadd [#allocation5], %s1447
      %s1449 = sshll.u32 [#allocation4], 4
      %s1450 = int_to_ptr.vmem [resolvable:$true] %s1449
      %1455 = dma.vmem_to_hbm [thread:$0]  %s1450, 256, %s12, [#allocation5], 128, 128, 8
    $region53: #{decoder_forward.1} parent=1 // pred_fallthru
      _
    // Predicated region
    $region54: #{decoder_forward.1} parent=1 // pred_check
      _
    $region55: #{decoder_forward.1} parent=1 // pred_check_branch
      %1457 = sbr.rel (0) target = $region57
    $region56: #{decoder_forward.1} parent=1 // pred_region
      %s1459 = ssub.s32 256, 256
      %1460 = vsyncadd [#allocation5], %s1459
      %s1461 = sshll.u32 [#allocation6], 4
      %s1462 = int_to_ptr.vmem [resolvable:$true] %s1461
      %1467 = dma.vmem_to_hbm [thread:$0]  %s1462, 256, %s13, [#allocation5], 128, 128, 8
    $region57: #{decoder_forward.1} parent=1 // pred_fallthru
      _
    // Predicated region
    $region58: #{decoder_forward.1} parent=1 // pred_check
      _
    $region59: #{decoder_forward.1} parent=1 // pred_check_branch
      %1469 = sbr.rel (0) target = $region61
    $region60: #{decoder_forward.1} parent=1 // pred_region
      %1470 = dma.done [#allocation3], 128
    $region61: #{decoder_forward.1} parent=1 // pred_fallthru
      _
    // Predicated region
    $region62: #{decoder_forward.1} parent=1 // pred_check
      _
    $region63: #{decoder_forward.1} parent=1 // pred_check_branch
      %1472 = sbr.rel (0) target = $region65
    $region64: #{decoder_forward.1} parent=1 // pred_region
      %1473 = dma.done [#allocation5], 256
    $region65: #{decoder_forward.1} parent=1 // pred_fallthru
      _
    // Predicated region
    $region66: #{decoder_forward.1} parent=1 // pred_check
      _
    $region67: #{decoder_forward.1} parent=1 // pred_check_branch
      %1475 = sbr.rel (0) target = $region69
    $region68: #{decoder_forward.1} parent=1 // pred_region
      %1476 = dma.done [#allocation5], 256
    $region69: #{decoder_forward.1} parent=1 // pred_fallthru
      _
    %1477 = vsyncpa [#allocation3], 1
    %1478 = vsyncpa [#allocation5], 1

</llo_original>
